<compile_context>
chip_gen: v5e
topology: v5e:2x2
jax: 0.10.0
libtpu: 0.0.40
codegen_flags: <defaults>
</compile_context>

<pallas_src>
import functools

import jax
import jax.numpy as jnp
from jax import lax
from jax.experimental import pallas as pl
from jax.experimental.pallas import tpu as pltpu


def _round_up(x, m):
    return (x + m - 1) // m * m


def _compute_dtype():
    """bf16 matmul operands on a real TPU; f32 elsewhere (CPU/interpret
    backends reject bf16 x bf16 = f32 dots)."""
    try:
        if jax.devices()[0].platform == "tpu":
            return jnp.bfloat16
    except Exception:
        pass
    return jnp.float32


def _vmem_capacity_bytes():
    """Per-core VMEM capacity; conservative 64 MiB (v7x floor) if unknown."""
    try:
        return int(pltpu.get_tpu_info().vmem_capacity_bytes)
    except Exception:
        return 64 * 1024 * 1024


def _tensorcores_per_chip():
    """Best-effort TensorCore count (megacore batch sharding decision only;
    correctness does not depend on this)."""
    try:
        dev = jax.devices()[0]
        if dev.platform != "tpu":
            return 1
        n = int(getattr(dev, "num_cores", 0))
        if n >= 1:
            return n
        kind = str(getattr(dev, "device_kind", "")).lower()
        if any(tag in kind for tag in ("v4", "v5p", "7")):   # 2-TC generations
            return 2
        return 1
    except Exception:
        return 1


# ----------------------------------------------------------------------------
# Pallas kernel: one GRU layer, one (batch-tile, time-block) grid step.
#   x_ref   : (T_BLOCK, B_TILE, In_p)   compute dtype (bf16 on TPU)
#   wih_ref : (In_p, 3*Hp)              compute dtype, grid-constant
#   whh_ref : (Hp, 3*Hp)                compute dtype, grid-constant
#   bias_ref: (1, 3*Hp) f32             b_ih (+ b_hr/b_hz folded), grid-constant
#   bhn_ref : (1, Hp)   f32             b_hn (n = tanh(gi_n + r*(W_hn h + b_hn)))
#   out_ref : (T_BLOCK, B_TILE, Hp)     layer output (bf16 mid-stack, f32 last)
#   hN_ref  : (B_TILE, Hp) f32          final hidden state (resident block)
#   h_scr   : (B_TILE, Hp) f32          hidden carry across time blocks
#   gi_scr  : (T_BLOCK, B_TILE, 3*Hp)   in-kernel input projection (f32)
# ----------------------------------------------------------------------------
def _gru_layer_kernel(x_ref, wih_ref, whh_ref, bias_ref, bhn_ref,
                      out_ref, hN_ref, h_scr, gi_scr,
                      *, seq_len, time_block, mask_tail, unroll):
    t_blk = pl.program_id(1)
    Hp = h_scr.shape[-1]
    T_BLOCK, B_TILE, In_p = x_ref.shape
    cdt = whh_ref.dtype

    @pl.when(t_blk == 0)
    def _():
        h_scr[...] = jnp.zeros_like(h_scr)       # h_0 = 0 (torch.nn.GRU default)

    # Fused input projection for the whole time block: one MXU GEMM with
    # M = T_BLOCK*B_TILE rows.  No f32 gi HBM round trip; folded bias is added
    # in-kernel on data already in VMEM.
    x = x_ref[...].reshape(T_BLOCK * B_TILE, In_p)
    gi = jnp.dot(x, wih_ref[...], preferred_element_type=jnp.float32)
    gi_scr[...] = (gi + bias_ref[...]).reshape(T_BLOCK, B_TILE, 3 * Hp)

    whh = whh_ref[...]                           # resident (Hp, 3Hp)
    bhn = bhn_ref[...]                           # (1, Hp)

    def sigmoid(u):                              # one EUP op (tanh), not exp+recip
        return 0.5 * jnp.tanh(0.5 * u) + 0.5

    def step(i, h):
        gi_i = gi_scr[i]                         # (B_TILE, 3Hp) f32
        # TODO(synk): weight-stationary MXU drive (matmul_push_rhs/acc_lhs/pop)
        # to avoid re-pushing the (Hp,3Hp) RHS each step when B_TILE << MXU width.
        gh = jnp.dot(h.astype(cdt), whh, preferred_element_type=jnp.float32)
        r = sigmoid(gi_i[:, 0 * Hp:1 * Hp] + gh[:, 0 * Hp:1 * Hp])
        z = sigmoid(gi_i[:, 1 * Hp:2 * Hp] + gh[:, 1 * Hp:2 * Hp])
        n = jnp.tanh(gi_i[:, 2 * Hp:3 * Hp] + r * (gh[:, 2 * Hp:3 * Hp] + bhn))
        h_new = (1.0 - z) * n + z * h            # f32 hidden carry
        if mask_tail:                            # static: only if T was padded
            keep = (t_blk * time_block + i < seq_len).astype(h.dtype)
            h_new = keep * h_new + (1.0 - keep) * h
        out_ref[i] = h_new.astype(out_ref.dtype)
        return h_new

    h_final = lax.fori_loop(0, T_BLOCK, step, h_scr[...], unroll=unroll)
    h_scr[...] = h_final                         # carry across time blocks
    hN_ref[...] = h_final.astype(hN_ref.dtype)   # resident block; last write wins


def _gru_layer(x_tm, wih, whh, bias, bhn, *, out_dtype):
    """x_tm: (T, Bp, In_p) time-major layer input (compute dtype).
    Returns (out (T_pad, Bp, Hp) out_dtype, h_T (Bp, Hp) f32)."""
    T, Bp, In_p = x_tm.shape
    Hp = whh.shape[0]
    csize = jnp.dtype(x_tm.dtype).itemsize
    osize = jnp.dtype(out_dtype).itemsize

    # Batch tiling: split only when >1 TensorCore AND each half still presents
    # a healthy M (>= 16 rows) to the MXU.  Single-TC v5e/v6e never split.
    B_TILE = Bp
    if _tensorcores_per_chip() >= 2 and Bp % 16 == 0 and Bp // 2 >= 16:
        B_TILE = Bp // 2

    # Time blocking sized from device VMEM (64 MiB on v7x, 128 MiB on v5e/v6e):
    # double-buffered x/out slabs + gi scratch alongside resident weights.
    fixed = (2 * (In_p + Hp) * 3 * Hp * csize     # wih + whh (double-buffered)
             + 2 * 4 * (3 * Hp + Hp)              # bias + bhn
             + 3 * B_TILE * Hp * 4)               # h scratch + hN output block
    per_step = B_TILE * (2 * In_p * csize         # x block (double-buffered)
                         + 2 * Hp * osize         # out block (double-buffered)
                         + 3 * Hp * 4)            # gi scratch (f32)
    vmem_cap = _vmem_capacity_bytes()
    budget = max(vmem_cap // 2 - fixed, per_step)
    T_BLOCK = int(max(1, min(T, budget // per_step, 512)))
    grid_t = int(pl.cdiv(T, T_BLOCK))             # no T % T_BLOCK == 0 requirement
    T_pad = grid_t * T_BLOCK
    if T_pad != T:
        x_tm = jnp.pad(x_tm, ((0, T_pad - T), (0, 0), (0, 0)))

    est = fixed + T_BLOCK * per_step
    vmem_limit = int(min(vmem_cap, max(2 * est, 32 << 20)))

    kernel = functools.partial(
        _gru_layer_kernel, seq_len=T, time_block=T_BLOCK,
        mask_tail=(T_pad != T), unroll=min(8, T_BLOCK))

    grid = (Bp // B_TILE, grid_t)
    return pl.pallas_call(
        kernel,
        out_shape=(jax.ShapeDtypeStruct((T_pad, Bp, Hp), out_dtype),
                   jax.ShapeDtypeStruct((Bp, Hp), jnp.float32)),
        grid_spec=pltpu.PrefetchScalarGridSpec(
            num_scalar_prefetch=0,
            grid=grid,
            in_specs=[
                pl.BlockSpec((T_BLOCK, B_TILE, In_p), lambda b, t: (t, b, 0)),
                # TODO(synk): pipeline_mode=pl.Buffered(1) on the grid-constant
                # weight blocks (skip double-buffering) once available in all
                # target jax versions.
                pl.BlockSpec((In_p, 3 * Hp), lambda b, t: (0, 0)),
                pl.BlockSpec((Hp, 3 * Hp), lambda b, t: (0, 0)),
                pl.BlockSpec((1, 3 * Hp), lambda b, t: (0, 0)),
                pl.BlockSpec((1, Hp), lambda b, t: (0, 0)),
            ],
            out_specs=[
                pl.BlockSpec((T_BLOCK, B_TILE, Hp), lambda b, t: (t, b, 0)),
                pl.BlockSpec((B_TILE, Hp), lambda b, t: (b, 0)),
            ],
            scratch_shapes=[
                pltpu.VMEM((B_TILE, Hp), jnp.float32),
                pltpu.VMEM((T_BLOCK, B_TILE, 3 * Hp), jnp.float32),
            ],
        ),
        compiler_params=pltpu.CompilerParams(
            dimension_semantics=("parallel", "arbitrary"),
            vmem_limit_bytes=vmem_limit),
    )(x_tm, wih, whh, bias, bhn)


# ----------------------------------------------------------------------------
# Parameters
# ----------------------------------------------------------------------------
def init_params(key, vocab_size, embed_size, num_hiddens, num_layers):
    """PyTorch-style init/layout: embedding ~ N(0,1); GRU weights/biases
    ~ U(-1/sqrt(H), 1/sqrt(H)); gate order (r, z, n)."""
    keys = jax.random.split(key, 1 + 4 * num_layers)
    params = {"embedding": jax.random.normal(
        keys[0], (vocab_size, embed_size), jnp.float32)}
    bound = 1.0 / float(num_hiddens) ** 0.5
    layers = []
    for l in range(num_layers):
        in_dim = embed_size if l == 0 else num_hiddens
        k = keys[1 + 4 * l: 1 + 4 * (l + 1)]
        layers.append({
            "wih": jax.random.uniform(k[0], (3 * num_hiddens, in_dim),
                                      jnp.float32, -bound, bound),
            "whh": jax.random.uniform(k[1], (3 * num_hiddens, num_hiddens),
                                      jnp.float32, -bound, bound),
            "bih": jax.random.uniform(k[2], (3 * num_hiddens,),
                                      jnp.float32, -bound, bound),
            "bhh": jax.random.uniform(k[3], (3 * num_hiddens,),
                                      jnp.float32, -bound, bound),
        })
    params["layers"] = layers
    return params


def prepare_params(params, num_hiddens):
    """Pad/transpose weights ONCE (outside jit) into kernel-friendly layout:
    gates lane-aligned (H -> Hp multiple of 128), input dim padded to a
    multiple of 128, weights pre-transposed to (In_p, 3Hp)/(Hp, 3Hp) in the
    compute dtype (bf16 on TPU), b_ih (+ b_hr/b_hz) folded into one (1, 3Hp)
    f32 bias added inside the kernel, and the embedding table padded/cast so
    lookups come out kernel-ready."""
    H = num_hiddens
    Hp = _round_up(H, 128)
    cdt = _compute_dtype()

    emb = params["embedding"]
    E = emb.shape[1]
    Ep = _round_up(E, 128)
    emb_p = jnp.zeros((emb.shape[0], Ep), cdt).at[:, :E].set(emb.astype(cdt))

    layers = []
    for lidx, lp in enumerate(params["layers"]):
        wih, whh = lp["wih"], lp["whh"]            # (3H, In), (3H, H) torch layout
        bih, bhh = lp["bih"], lp["bhh"]            # (3H,), (3H,)
        In = wih.shape[1]
        In_p = Ep if lidx == 0 else Hp             # later layers consume padded h
        wih_p = jnp.zeros((In_p, 3 * Hp), jnp.float32)
        whh_p = jnp.zeros((Hp, 3 * Hp), jnp.float32)
        bias = jnp.zeros((1, 3 * Hp), jnp.float32)
        for g in range(3):                         # PyTorch gate order: r, z, n
            wih_p = wih_p.at[:In, g * Hp:g * Hp + H].set(wih[g * H:(g + 1) * H].T)
            whh_p = whh_p.at[:H, g * Hp:g * Hp + H].set(whh[g * H:(g + 1) * H].T)
            b = bih[g * H:(g + 1) * H]
            if g < 2:                              # b_hr / b_hz can be pre-summed
                b = b + bhh[g * H:(g + 1) * H]
            bias = bias.at[0, g * Hp:g * Hp + H].set(b)
        bhn = jnp.zeros((1, Hp), jnp.float32).at[0, :H].set(bhh[2 * H:3 * H])
        layers.append({"wih": wih_p.astype(cdt), "whh": whh_p.astype(cdt),
                       "bias": bias, "bhn": bhn})
    return {"embedding": emb_p, "layers": layers}


# ----------------------------------------------------------------------------
# Seq2SeqEncoder forward
# ----------------------------------------------------------------------------
@functools.partial(jax.jit, static_argnames=("num_hiddens",))
def seq2seq_encoder_forward(prepped, X, *, num_hiddens):
    """X: (batch, seq) int32 token ids.
    Returns (output (seq, batch, H), state (num_layers, batch, H)), both f32,
    matching torch.nn.GRU (output = top-layer hidden per step, state = final
    hidden of every layer)."""
    B, T = X.shape
    H = num_hiddens
    Bp = _round_up(B, 8)
    n_layers = len(prepped["layers"])

    # Embedding lookup emitted directly time-major (T, B, Ep), compute dtype.
    x_tm = jnp.take(prepped["embedding"], X.T, axis=0)
    if Bp > B:
        # Padded batch rows evolve to nonzero hidden states (gi = bias there);
        # they are sliced off at the end — never rely on them being zero.
        x_tm = jnp.pad(x_tm, ((0, 0), (0, Bp - B), (0, 0)))

    finals = []
    for lidx, lp in enumerate(prepped["layers"]):
        last = lidx == n_layers - 1
        out_dtype = jnp.float32 if last else lp["whh"].dtype
        y, h_final = _gru_layer(x_tm, lp["wih"], lp["whh"], lp["bias"],
                                lp["bhn"], out_dtype=out_dtype)
        finals.append(h_final)
        x_tm = y[:T]                               # drop any time padding
        # TODO(synk): inter-layer dropout (dropout=0 here, matching default).

    output = x_tm[:, :B, :H].astype(jnp.float32)              # (T, B, H)
    state = jnp.stack(finals, axis=0)[:, :B, :H]               # (L, B, H)
    return output, state


# ----------------------------------------------------------------------------
# Pure-JAX f32 reference (torch.nn.GRU semantics) for in-script validation.
# ----------------------------------------------------------------------------
def _reference_forward(params, X, num_hiddens):
    H = num_hiddens
    emb = jnp.take(params["embedding"], X, axis=0)             # (B, T, E)
    x = jnp.transpose(emb, (1, 0, 2)).astype(jnp.float32)      # (T, B, E)
    finals = []
    for lp in params["layers"]:
        wih, whh, bih, bhh = lp["wih"], lp["whh"], lp["bih"], lp["bhh"]

        def step(h, xt, wih=wih, whh=whh, bih=bih, bhh=bhh):
            gi = xt @ wih.T + bih
            gh = h @ whh.T + bhh
            r = jax.nn.sigmoid(gi[:, :H] + gh[:, :H])
            z = jax.nn.sigmoid(gi[:, H:2 * H] + gh[:, H:2 * H])
            n = jnp.tanh(gi[:, 2 * H:] + r * gh[:, 2 * H:])
            h_new = (1.0 - z) * n + z * h
            return h_new, h_new

        h0 = jnp.zeros((x.shape[1], H), jnp.float32)
        hT, x = lax.scan(step, h0, x)
        finals.append(hT)
    return x, jnp.stack(finals, axis=0)


if __name__ == "__main__":
    vocab_size, embed_size, num_hiddens, num_layers = 20, 8, 32, 2
    batch, seq = 2, 8

    key = jax.random.PRNGKey(0)
    kp, kx = jax.random.split(key)
    params = init_params(kp, vocab_size, embed_size, num_hiddens, num_layers)
    X = jax.random.randint(kx, (batch, seq), 0, vocab_size, dtype=jnp.int32)

    prepped = prepare_params(params, num_hiddens)
    output, state = seq2seq_encoder_forward(prepped, X, num_hiddens=num_hiddens)
    jax.block_until_ready((output, state))

    assert output.shape == (seq, batch, num_hiddens)
    assert state.shape == (num_layers, batch, num_hiddens)
    assert output.dtype == jnp.float32 and state.dtype == jnp.float32

    # Validate against a pure-JAX f32 reference of the torch.nn.GRU math.
    # bf16 matmul operands on TPU introduce small drift; f32 path is near-exact.
    ref_out, ref_state = _reference_forward(params, X, num_hiddens)
    tol = 1e-1 if prepped["layers"][0]["whh"].dtype == jnp.bfloat16 else 1e-4
    assert float(jnp.max(jnp.abs(output - ref_out))) < tol
    assert float(jnp.max(jnp.abs(state - ref_state))) < tol

    print("KERNEL_OK")
</pallas_src>

<mosaic_0001>
module attributes {stable_mosaic.version = 11 : i64} {
  func.func @_gru_layer_kernel(%arg0: i32, %arg1: i32, %arg2: memref<8x8x128xf32, #tpu.memory_space<vmem>>, %arg3: memref<128x384xf32, #tpu.memory_space<vmem>>, %arg4: memref<128x384xf32, #tpu.memory_space<vmem>>, %arg5: memref<1x384xf32, #tpu.memory_space<vmem>>, %arg6: memref<1x128xf32, #tpu.memory_space<vmem>>, %arg7: memref<8x8x128xf32, #tpu.memory_space<vmem>>, %arg8: memref<8x128xf32, #tpu.memory_space<vmem>>, %arg9: memref<8x128xf32, #tpu.memory_space<vmem>>, %arg10: memref<8x8x384xf32, #tpu.memory_space<vmem>>) attributes {dimension_semantics = [#tpu.dimension_semantics<parallel>, #tpu.dimension_semantics<arbitrary>], iteration_bounds = array<i64: 1, 1>, scalar_prefetch = 0 : i64, scratch_operands = 2 : i64, tpu.core_type = #tpu.core_type<tc>, window_params = [{transform_indices = @transform_0, window_bounds = array<i64: 8, 8, 128>}, {pipeline_mode = #tpu.pipeline_mode<synchronous>, transform_indices = @transform_1, window_bounds = array<i64: 128, 384>}, {pipeline_mode = #tpu.pipeline_mode<synchronous>, transform_indices = @transform_2, window_bounds = array<i64: 128, 384>}, {pipeline_mode = #tpu.pipeline_mode<synchronous>, transform_indices = @transform_3, window_bounds = array<i64: 1, 384>}, {pipeline_mode = #tpu.pipeline_mode<synchronous>, transform_indices = @transform_4, window_bounds = array<i64: 1, 128>}, {transform_indices = @transform_5, window_bounds = array<i64: 8, 8, 128>}, {transform_indices = @transform_6, window_bounds = array<i64: 8, 128>}]} {
    %c0_i32 = arith.constant 0 : i32
    %0 = arith.cmpi eq, %arg1, %c0_i32 : i32
    %1 = arith.extui %0 : i1 to i32
    %c0_i32_0 = arith.constant 0 : i32
    %2 = arith.cmpi ne, %1, %c0_i32_0 : i32
    scf.if %2 {
      %cst_117 = arith.constant 0.000000e+00 : f32
      %337 = vector.broadcast %cst_117 : f32 to vector<8x128xf32>
      %c0_118 = arith.constant 0 : index
      %c0_119 = arith.constant 0 : index
      %338 = vector.load %arg9[%c0_118, %c0_119] : memref<8x128xf32, #tpu.memory_space<vmem>>, vector<8x128xf32>
      tpu.vector_store %arg9[%c0_118, %c0_119], %337 {strides = array<i32>} : memref<8x128xf32, #tpu.memory_space<vmem>>, vector<8x128xf32>,
    } else {
    }
    %c0 = arith.constant 0 : index
    %c0_1 = arith.constant 0 : index
    %c0_2 = arith.constant 0 : index
    %3 = vector.load %arg2[%c0, %c0_1, %c0_2] : memref<8x8x128xf32, #tpu.memory_space<vmem>>, vector<8x8x128xf32>
    %4 = vector.shape_cast %3 : vector<8x8x128xf32> to vector<64x128xf32>
    %c0_3 = arith.constant 0 : index
    %c0_4 = arith.constant 0 : index
    %5 = vector.load %arg3[%c0_3, %c0_4] : memref<128x384xf32, #tpu.memory_space<vmem>>, vector<128x384xf32>
    %cst = arith.constant dense<0.000000e+00> : vector<64x384xf32>
    %6 = tpu.matmul %4, %5, %cst {dimension_numbers = #tpu.dot_dimension_numbers<[1], [0], [0], [1], [0, 0, 1, 1], [], []>} : vector<64x128xf32>, vector<128x384xf32>, vector<64x384xf32> -> vector<64x384xf32>
    %c0_5 = arith.constant 0 : index
    %c0_6 = arith.constant 0 : index
    %7 = vector.load %arg5[%c0_5, %c0_6] : memref<1x384xf32, #tpu.memory_space<vmem>>, vector<1x384xf32>
    %8 = vector.broadcast %7 : vector<1x384xf32> to vector<64x384xf32>
    %9 = arith.addf %6, %8 : vector<64x384xf32>
    %10 = vector.shape_cast %9 : vector<64x384xf32> to vector<8x8x384xf32>
    %c0_7 = arith.constant 0 : index
    %c0_8 = arith.constant 0 : index
    %c0_9 = arith.constant 0 : index
    %11 = vector.load %arg10[%c0_7, %c0_8, %c0_9] : memref<8x8x384xf32, #tpu.memory_space<vmem>>, vector<8x8x384xf32>
    tpu.vector_store %arg10[%c0_7, %c0_8, %c0_9], %10 {strides = array<i32>} : memref<8x8x384xf32, #tpu.memory_space<vmem>>, vector<8x8x384xf32>,
    %c0_10 = arith.constant 0 : index
    %c0_11 = arith.constant 0 : index
    %12 = vector.load %arg4[%c0_10, %c0_11] : memref<128x384xf32, #tpu.memory_space<vmem>>, vector<128x384xf32>
    %c0_12 = arith.constant 0 : index
    %c0_13 = arith.constant 0 : index
    %13 = vector.load %arg6[%c0_12, %c0_13] : memref<1x128xf32, #tpu.memory_space<vmem>>, vector<1x128xf32>
    %c0_14 = arith.constant 0 : index
    %c0_15 = arith.constant 0 : index
    %14 = vector.load %arg9[%c0_14, %c0_15] : memref<8x128xf32, #tpu.memory_space<vmem>>, vector<8x128xf32>
    %c0_i32_16 = arith.constant 0 : i32
    %15 = arith.index_cast %c0_i32_16 : i32 to index
    %c0_17 = arith.constant 0 : index
    %c0_18 = arith.constant 0 : index
    %16 = vector.load %arg10[%15, %c0_17, %c0_18] : memref<8x8x384xf32, #tpu.memory_space<vmem>>, vector<1x8x384xf32>
    %17 = vector.shape_cast %16 : vector<1x8x384xf32> to vector<8x384xf32>
    %cst_19 = arith.constant dense<0.000000e+00> : vector<8x384xf32>
    %18 = tpu.matmul %14, %12, %cst_19 {dimension_numbers = #tpu.dot_dimension_numbers<[1], [0], [0], [1], [0, 0, 1, 1], [], []>} : vector<8x128xf32>, vector<128x384xf32>, vector<8x384xf32> -> vector<8x384xf32>
    %19 = vector.extract_strided_slice %17 {offsets = [0, 0], sizes = [8, 128], strides = [1, 1]} : vector<8x384xf32> to vector<8x128xf32>
    %20 = vector.extract_strided_slice %18 {offsets = [0, 0], sizes = [8, 128], strides = [1, 1]} : vector<8x384xf32> to vector<8x128xf32>
    %21 = arith.addf %19, %20 : vector<8x128xf32>
    %cst_20 = arith.constant 5.000000e-01 : f32
    %22 = vector.broadcast %cst_20 : f32 to vector<8x128xf32>
    %23 = arith.mulf %22, %21 : vector<8x128xf32>
    %24 = math.tanh %23 : vector<8x128xf32>
    %cst_21 = arith.constant 5.000000e-01 : f32
    %25 = vector.broadcast %cst_21 : f32 to vector<8x128xf32>
    %26 = arith.mulf %25, %24 : vector<8x128xf32>
    %cst_22 = arith.constant 5.000000e-01 : f32
    %27 = vector.broadcast %cst_22 : f32 to vector<8x128xf32>
    %28 = arith.addf %26, %27 : vector<8x128xf32>
    %29 = vector.extract_strided_slice %17 {offsets = [0, 128], sizes = [8, 128], strides = [1, 1]} : vector<8x384xf32> to vector<8x128xf32>
    %30 = vector.extract_strided_slice %18 {offsets = [0, 128], sizes = [8, 128], strides = [1, 1]} : vector<8x384xf32> to vector<8x128xf32>
    %31 = arith.addf %29, %30 : vector<8x128xf32>
    %cst_23 = arith.constant 5.000000e-01 : f32
    %32 = vector.broadcast %cst_23 : f32 to vector<8x128xf32>
    %33 = arith.mulf %32, %31 : vector<8x128xf32>
    %34 = math.tanh %33 : vector<8x128xf32>
    %cst_24 = arith.constant 5.000000e-01 : f32
    %35 = vector.broadcast %cst_24 : f32 to vector<8x128xf32>
    %36 = arith.mulf %35, %34 : vector<8x128xf32>
    %cst_25 = arith.constant 5.000000e-01 : f32
    %37 = vector.broadcast %cst_25 : f32 to vector<8x128xf32>
    %38 = arith.addf %36, %37 : vector<8x128xf32>
    %39 = vector.extract_strided_slice %17 {offsets = [0, 256], sizes = [8, 128], strides = [1, 1]} : vector<8x384xf32> to vector<8x128xf32>
    %40 = vector.extract_strided_slice %18 {offsets = [0, 256], sizes = [8, 128], strides = [1, 1]} : vector<8x384xf32> to vector<8x128xf32>
    %41 = vector.broadcast %13 : vector<1x128xf32> to vector<8x128xf32>
    %42 = arith.addf %40, %41 : vector<8x128xf32>
    %43 = arith.mulf %28, %42 : vector<8x128xf32>
    %44 = arith.addf %39, %43 : vector<8x128xf32>
    %45 = math.tanh %44 : vector<8x128xf32>
    %cst_26 = arith.constant 1.000000e+00 : f32
    %46 = vector.broadcast %cst_26 : f32 to vector<8x128xf32>
    %47 = arith.subf %46, %38 : vector<8x128xf32>
    %48 = arith.mulf %47, %45 : vector<8x128xf32>
    %49 = arith.mulf %38, %14 : vector<8x128xf32>
    %50 = arith.addf %48, %49 : vector<8x128xf32>
    %51 = arith.index_cast %c0_i32_16 : i32 to index
    %c0_27 = arith.constant 0 : index
    %c0_28 = arith.constant 0 : index
    %52 = vector.load %arg7[%51, %c0_27, %c0_28] : memref<8x8x128xf32, #tpu.memory_space<vmem>>, vector<1x8x128xf32>
    %53 = vector.shape_cast %52 : vector<1x8x128xf32> to vector<8x128xf32>
    %54 = vector.shape_cast %50 : vector<8x128xf32> to vector<1x8x128xf32>
    tpu.vector_store %arg7[%51, %c0_27, %c0_28], %54 {strides = array<i32>} : memref<8x8x128xf32, #tpu.memory_space<vmem>>, vector<1x8x128xf32>,
    %c1_i32 = arith.constant 1 : i32
    %55 = arith.index_cast %c1_i32 : i32 to index
    %c0_29 = arith.constant 0 : index
    %c0_30 = arith.constant 0 : index
    %56 = vector.load %arg10[%55, %c0_29, %c0_30] : memref<8x8x384xf32, #tpu.memory_space<vmem>>, vector<1x8x384xf32>
    %57 = vector.shape_cast %56 : vector<1x8x384xf32> to vector<8x384xf32>
    %cst_31 = arith.constant dense<0.000000e+00> : vector<8x384xf32>
    %58 = tpu.matmul %50, %12, %cst_31 {dimension_numbers = #tpu.dot_dimension_numbers<[1], [0], [0], [1], [0, 0, 1, 1], [], []>} : vector<8x128xf32>, vector<128x384xf32>, vector<8x384xf32> -> vector<8x384xf32>
    %59 = vector.extract_strided_slice %57 {offsets = [0, 0], sizes = [8, 128], strides = [1, 1]} : vector<8x384xf32> to vector<8x128xf32>
    %60 = vector.extract_strided_slice %58 {offsets = [0, 0], sizes = [8, 128], strides = [1, 1]} : vector<8x384xf32> to vector<8x128xf32>
    %61 = arith.addf %59, %60 : vector<8x128xf32>
    %cst_32 = arith.constant 5.000000e-01 : f32
    %62 = vector.broadcast %cst_32 : f32 to vector<8x128xf32>
    %63 = arith.mulf %62, %61 : vector<8x128xf32>
    %64 = math.tanh %63 : vector<8x128xf32>
    %cst_33 = arith.constant 5.000000e-01 : f32
    %65 = vector.broadcast %cst_33 : f32 to vector<8x128xf32>
    %66 = arith.mulf %65, %64 : vector<8x128xf32>
    %cst_34 = arith.constant 5.000000e-01 : f32
    %67 = vector.broadcast %cst_34 : f32 to vector<8x128xf32>
    %68 = arith.addf %66, %67 : vector<8x128xf32>
    %69 = vector.extract_strided_slice %57 {offsets = [0, 128], sizes = [8, 128], strides = [1, 1]} : vector<8x384xf32> to vector<8x128xf32>
    %70 = vector.extract_strided_slice %58 {offsets = [0, 128], sizes = [8, 128], strides = [1, 1]} : vector<8x384xf32> to vector<8x128xf32>
    %71 = arith.addf %69, %70 : vector<8x128xf32>
    %cst_35 = arith.constant 5.000000e-01 : f32
    %72 = vector.broadcast %cst_35 : f32 to vector<8x128xf32>
    %73 = arith.mulf %72, %71 : vector<8x128xf32>
    %74 = math.tanh %73 : vector<8x128xf32>
    %cst_36 = arith.constant 5.000000e-01 : f32
    %75 = vector.broadcast %cst_36 : f32 to vector<8x128xf32>
    %76 = arith.mulf %75, %74 : vector<8x128xf32>
    %cst_37 = arith.constant 5.000000e-01 : f32
    %77 = vector.broadcast %cst_37 : f32 to vector<8x128xf32>
    %78 = arith.addf %76, %77 : vector<8x128xf32>
    %79 = vector.extract_strided_slice %57 {offsets = [0, 256], sizes = [8, 128], strides = [1, 1]} : vector<8x384xf32> to vector<8x128xf32>
    %80 = vector.extract_strided_slice %58 {offsets = [0, 256], sizes = [8, 128], strides = [1, 1]} : vector<8x384xf32> to vector<8x128xf32>
    %81 = vector.broadcast %13 : vector<1x128xf32> to vector<8x128xf32>
    %82 = arith.addf %80, %81 : vector<8x128xf32>
    %83 = arith.mulf %68, %82 : vector<8x128xf32>
    %84 = arith.addf %79, %83 : vector<8x128xf32>
    %85 = math.tanh %84 : vector<8x128xf32>
    %cst_38 = arith.constant 1.000000e+00 : f32
    %86 = vector.broadcast %cst_38 : f32 to vector<8x128xf32>
    %87 = arith.subf %86, %78 : vector<8x128xf32>
    %88 = arith.mulf %87, %85 : vector<8x128xf32>
    %89 = arith.mulf %78, %50 : vector<8x128xf32>
    %90 = arith.addf %88, %89 : vector<8x128xf32>
    %91 = arith.index_cast %c1_i32 : i32 to index
    %c0_39 = arith.constant 0 : index
    %c0_40 = arith.constant 0 : index
    %92 = vector.load %arg7[%91, %c0_39, %c0_40] : memref<8x8x128xf32, #tpu.memory_space<vmem>>, vector<1x8x128xf32>
    %93 = vector.shape_cast %92 : vector<1x8x128xf32> to vector<8x128xf32>
    %94 = vector.shape_cast %90 : vector<8x128xf32> to vector<1x8x128xf32>
    tpu.vector_store %arg7[%91, %c0_39, %c0_40], %94 {strides = array<i32>} : memref<8x8x128xf32, #tpu.memory_space<vmem>>, vector<1x8x128xf32>,
    %c2_i32 = arith.constant 2 : i32
    %95 = arith.index_cast %c2_i32 : i32 to index
    %c0_41 = arith.constant 0 : index
    %c0_42 = arith.constant 0 : index
    %96 = vector.load %arg10[%95, %c0_41, %c0_42] : memref<8x8x384xf32, #tpu.memory_space<vmem>>, vector<1x8x384xf32>
    %97 = vector.shape_cast %96 : vector<1x8x384xf32> to vector<8x384xf32>
    %cst_43 = arith.constant dense<0.000000e+00> : vector<8x384xf32>
    %98 = tpu.matmul %90, %12, %cst_43 {dimension_numbers = #tpu.dot_dimension_numbers<[1], [0], [0], [1], [0, 0, 1, 1], [], []>} : vector<8x128xf32>, vector<128x384xf32>, vector<8x384xf32> -> vector<8x384xf32>
    %99 = vector.extract_strided_slice %97 {offsets = [0, 0], sizes = [8, 128], strides = [1, 1]} : vector<8x384xf32> to vector<8x128xf32>
    %100 = vector.extract_strided_slice %98 {offsets = [0, 0], sizes = [8, 128], strides = [1, 1]} : vector<8x384xf32> to vector<8x128xf32>
    %101 = arith.addf %99, %100 : vector<8x128xf32>
    %cst_44 = arith.constant 5.000000e-01 : f32
    %102 = vector.broadcast %cst_44 : f32 to vector<8x128xf32>
    %103 = arith.mulf %102, %101 : vector<8x128xf32>
    %104 = math.tanh %103 : vector<8x128xf32>
    %cst_45 = arith.constant 5.000000e-01 : f32
    %105 = vector.broadcast %cst_45 : f32 to vector<8x128xf32>
    %106 = arith.mulf %105, %104 : vector<8x128xf32>
    %cst_46 = arith.constant 5.000000e-01 : f32
    %107 = vector.broadcast %cst_46 : f32 to vector<8x128xf32>
    %108 = arith.addf %106, %107 : vector<8x128xf32>
    %109 = vector.extract_strided_slice %97 {offsets = [0, 128], sizes = [8, 128], strides = [1, 1]} : vector<8x384xf32> to vector<8x128xf32>
    %110 = vector.extract_strided_slice %98 {offsets = [0, 128], sizes = [8, 128], strides = [1, 1]} : vector<8x384xf32> to vector<8x128xf32>
    %111 = arith.addf %109, %110 : vector<8x128xf32>
    %cst_47 = arith.constant 5.000000e-01 : f32
    %112 = vector.broadcast %cst_47 : f32 to vector<8x128xf32>
    %113 = arith.mulf %112, %111 : vector<8x128xf32>
    %114 = math.tanh %113 : vector<8x128xf32>
    %cst_48 = arith.constant 5.000000e-01 : f32
    %115 = vector.broadcast %cst_48 : f32 to vector<8x128xf32>
    %116 = arith.mulf %115, %114 : vector<8x128xf32>
    %cst_49 = arith.constant 5.000000e-01 : f32
    %117 = vector.broadcast %cst_49 : f32 to vector<8x128xf32>
    %118 = arith.addf %116, %117 : vector<8x128xf32>
    %119 = vector.extract_strided_slice %97 {offsets = [0, 256], sizes = [8, 128], strides = [1, 1]} : vector<8x384xf32> to vector<8x128xf32>
    %120 = vector.extract_strided_slice %98 {offsets = [0, 256], sizes = [8, 128], strides = [1, 1]} : vector<8x384xf32> to vector<8x128xf32>
    %121 = vector.broadcast %13 : vector<1x128xf32> to vector<8x128xf32>
    %122 = arith.addf %120, %121 : vector<8x128xf32>
    %123 = arith.mulf %108, %122 : vector<8x128xf32>
    %124 = arith.addf %119, %123 : vector<8x128xf32>
    %125 = math.tanh %124 : vector<8x128xf32>
    %cst_50 = arith.constant 1.000000e+00 : f32
    %126 = vector.broadcast %cst_50 : f32 to vector<8x128xf32>
    %127 = arith.subf %126, %118 : vector<8x128xf32>
    %128 = arith.mulf %127, %125 : vector<8x128xf32>
    %129 = arith.mulf %118, %90 : vector<8x128xf32>
    %130 = arith.addf %128, %129 : vector<8x128xf32>
    %131 = arith.index_cast %c2_i32 : i32 to index
    %c0_51 = arith.constant 0 : index
    %c0_52 = arith.constant 0 : index
    %132 = vector.load %arg7[%131, %c0_51, %c0_52] : memref<8x8x128xf32, #tpu.memory_space<vmem>>, vector<1x8x128xf32>
    %133 = vector.shape_cast %132 : vector<1x8x128xf32> to vector<8x128xf32>
    %134 = vector.shape_cast %130 : vector<8x128xf32> to vector<1x8x128xf32>
    tpu.vector_store %arg7[%131, %c0_51, %c0_52], %134 {strides = array<i32>} : memref<8x8x128xf32, #tpu.memory_space<vmem>>, vector<1x8x128xf32>,
    %c3_i32 = arith.constant 3 : i32
    %135 = arith.index_cast %c3_i32 : i32 to index
    %c0_53 = arith.constant 0 : index
    %c0_54 = arith.constant 0 : index
    %136 = vector.load %arg10[%135, %c0_53, %c0_54] : memref<8x8x384xf32, #tpu.memory_space<vmem>>, vector<1x8x384xf32>
    %137 = vector.shape_cast %136 : vector<1x8x384xf32> to vector<8x384xf32>
    %cst_55 = arith.constant dense<0.000000e+00> : vector<8x384xf32>
    %138 = tpu.matmul %130, %12, %cst_55 {dimension_numbers = #tpu.dot_dimension_numbers<[1], [0], [0], [1], [0, 0, 1, 1], [], []>} : vector<8x128xf32>, vector<128x384xf32>, vector<8x384xf32> -> vector<8x384xf32>
    %139 = vector.extract_strided_slice %137 {offsets = [0, 0], sizes = [8, 128], strides = [1, 1]} : vector<8x384xf32> to vector<8x128xf32>
    %140 = vector.extract_strided_slice %138 {offsets = [0, 0], sizes = [8, 128], strides = [1, 1]} : vector<8x384xf32> to vector<8x128xf32>
    %141 = arith.addf %139, %140 : vector<8x128xf32>
    %cst_56 = arith.constant 5.000000e-01 : f32
    %142 = vector.broadcast %cst_56 : f32 to vector<8x128xf32>
    %143 = arith.mulf %142, %141 : vector<8x128xf32>
    %144 = math.tanh %143 : vector<8x128xf32>
    %cst_57 = arith.constant 5.000000e-01 : f32
    %145 = vector.broadcast %cst_57 : f32 to vector<8x128xf32>
    %146 = arith.mulf %145, %144 : vector<8x128xf32>
    %cst_58 = arith.constant 5.000000e-01 : f32
    %147 = vector.broadcast %cst_58 : f32 to vector<8x128xf32>
    %148 = arith.addf %146, %147 : vector<8x128xf32>
    %149 = vector.extract_strided_slice %137 {offsets = [0, 128], sizes = [8, 128], strides = [1, 1]} : vector<8x384xf32> to vector<8x128xf32>
    %150 = vector.extract_strided_slice %138 {offsets = [0, 128], sizes = [8, 128], strides = [1, 1]} : vector<8x384xf32> to vector<8x128xf32>
    %151 = arith.addf %149, %150 : vector<8x128xf32>
    %cst_59 = arith.constant 5.000000e-01 : f32
    %152 = vector.broadcast %cst_59 : f32 to vector<8x128xf32>
    %153 = arith.mulf %152, %151 : vector<8x128xf32>
    %154 = math.tanh %153 : vector<8x128xf32>
    %cst_60 = arith.constant 5.000000e-01 : f32
    %155 = vector.broadcast %cst_60 : f32 to vector<8x128xf32>
    %156 = arith.mulf %155, %154 : vector<8x128xf32>
    %cst_61 = arith.constant 5.000000e-01 : f32
    %157 = vector.broadcast %cst_61 : f32 to vector<8x128xf32>
    %158 = arith.addf %156, %157 : vector<8x128xf32>
    %159 = vector.extract_strided_slice %137 {offsets = [0, 256], sizes = [8, 128], strides = [1, 1]} : vector<8x384xf32> to vector<8x128xf32>
    %160 = vector.extract_strided_slice %138 {offsets = [0, 256], sizes = [8, 128], strides = [1, 1]} : vector<8x384xf32> to vector<8x128xf32>
    %161 = vector.broadcast %13 : vector<1x128xf32> to vector<8x128xf32>
    %162 = arith.addf %160, %161 : vector<8x128xf32>
    %163 = arith.mulf %148, %162 : vector<8x128xf32>
    %164 = arith.addf %159, %163 : vector<8x128xf32>
    %165 = math.tanh %164 : vector<8x128xf32>
    %cst_62 = arith.constant 1.000000e+00 : f32
    %166 = vector.broadcast %cst_62 : f32 to vector<8x128xf32>
    %167 = arith.subf %166, %158 : vector<8x128xf32>
    %168 = arith.mulf %167, %165 : vector<8x128xf32>
    %169 = arith.mulf %158, %130 : vector<8x128xf32>
    %170 = arith.addf %168, %169 : vector<8x128xf32>
    %171 = arith.index_cast %c3_i32 : i32 to index
    %c0_63 = arith.constant 0 : index
    %c0_64 = arith.constant 0 : index
    %172 = vector.load %arg7[%171, %c0_63, %c0_64] : memref<8x8x128xf32, #tpu.memory_space<vmem>>, vector<1x8x128xf32>
    %173 = vector.shape_cast %172 : vector<1x8x128xf32> to vector<8x128xf32>
    %174 = vector.shape_cast %170 : vector<8x128xf32> to vector<1x8x128xf32>
    tpu.vector_store %arg7[%171, %c0_63, %c0_64], %174 {strides = array<i32>} : memref<8x8x128xf32, #tpu.memory_space<vmem>>, vector<1x8x128xf32>,
    %c4_i32 = arith.constant 4 : i32
    %175 = arith.index_cast %c4_i32 : i32 to index
    %c0_65 = arith.constant 0 : index
    %c0_66 = arith.constant 0 : index
    %176 = vector.load %arg10[%175, %c0_65, %c0_66] : memref<8x8x384xf32, #tpu.memory_space<vmem>>, vector<1x8x384xf32>
    %177 = vector.shape_cast %176 : vector<1x8x384xf32> to vector<8x384xf32>
    %cst_67 = arith.constant dense<0.000000e+00> : vector<8x384xf32>
    %178 = tpu.matmul %170, %12, %cst_67 {dimension_numbers = #tpu.dot_dimension_numbers<[1], [0], [0], [1], [0, 0, 1, 1], [], []>} : vector<8x128xf32>, vector<128x384xf32>, vector<8x384xf32> -> vector<8x384xf32>
    %179 = vector.extract_strided_slice %177 {offsets = [0, 0], sizes = [8, 128], strides = [1, 1]} : vector<8x384xf32> to vector<8x128xf32>
    %180 = vector.extract_strided_slice %178 {offsets = [0, 0], sizes = [8, 128], strides = [1, 1]} : vector<8x384xf32> to vector<8x128xf32>
    %181 = arith.addf %179, %180 : vector<8x128xf32>
    %cst_68 = arith.constant 5.000000e-01 : f32
    %182 = vector.broadcast %cst_68 : f32 to vector<8x128xf32>
    %183 = arith.mulf %182, %181 : vector<8x128xf32>
    %184 = math.tanh %183 : vector<8x128xf32>
    %cst_69 = arith.constant 5.000000e-01 : f32
    %185 = vector.broadcast %cst_69 : f32 to vector<8x128xf32>
    %186 = arith.mulf %185, %184 : vector<8x128xf32>
    %cst_70 = arith.constant 5.000000e-01 : f32
    %187 = vector.broadcast %cst_70 : f32 to vector<8x128xf32>
    %188 = arith.addf %186, %187 : vector<8x128xf32>
    %189 = vector.extract_strided_slice %177 {offsets = [0, 128], sizes = [8, 128], strides = [1, 1]} : vector<8x384xf32> to vector<8x128xf32>
    %190 = vector.extract_strided_slice %178 {offsets = [0, 128], sizes = [8, 128], strides = [1, 1]} : vector<8x384xf32> to vector<8x128xf32>
    %191 = arith.addf %189, %190 : vector<8x128xf32>
    %cst_71 = arith.constant 5.000000e-01 : f32
    %192 = vector.broadcast %cst_71 : f32 to vector<8x128xf32>
    %193 = arith.mulf %192, %191 : vector<8x128xf32>
    %194 = math.tanh %193 : vector<8x128xf32>
    %cst_72 = arith.constant 5.000000e-01 : f32
    %195 = vector.broadcast %cst_72 : f32 to vector<8x128xf32>
    %196 = arith.mulf %195, %194 : vector<8x128xf32>
    %cst_73 = arith.constant 5.000000e-01 : f32
    %197 = vector.broadcast %cst_73 : f32 to vector<8x128xf32>
    %198 = arith.addf %196, %197 : vector<8x128xf32>
    %199 = vector.extract_strided_slice %177 {offsets = [0, 256], sizes = [8, 128], strides = [1, 1]} : vector<8x384xf32> to vector<8x128xf32>
    %200 = vector.extract_strided_slice %178 {offsets = [0, 256], sizes = [8, 128], strides = [1, 1]} : vector<8x384xf32> to vector<8x128xf32>
    %201 = vector.broadcast %13 : vector<1x128xf32> to vector<8x128xf32>
    %202 = arith.addf %200, %201 : vector<8x128xf32>
    %203 = arith.mulf %188, %202 : vector<8x128xf32>
    %204 = arith.addf %199, %203 : vector<8x128xf32>
    %205 = math.tanh %204 : vector<8x128xf32>
    %cst_74 = arith.constant 1.000000e+00 : f32
    %206 = vector.broadcast %cst_74 : f32 to vector<8x128xf32>
    %207 = arith.subf %206, %198 : vector<8x128xf32>
    %208 = arith.mulf %207, %205 : vector<8x128xf32>
    %209 = arith.mulf %198, %170 : vector<8x128xf32>
    %210 = arith.addf %208, %209 : vector<8x128xf32>
    %211 = arith.index_cast %c4_i32 : i32 to index
    %c0_75 = arith.constant 0 : index
    %c0_76 = arith.constant 0 : index
    %212 = vector.load %arg7[%211, %c0_75, %c0_76] : memref<8x8x128xf32, #tpu.memory_space<vmem>>, vector<1x8x128xf32>
    %213 = vector.shape_cast %212 : vector<1x8x128xf32> to vector<8x128xf32>
    %214 = vector.shape_cast %210 : vector<8x128xf32> to vector<1x8x128xf32>
    tpu.vector_store %arg7[%211, %c0_75, %c0_76], %214 {strides = array<i32>} : memref<8x8x128xf32, #tpu.memory_space<vmem>>, vector<1x8x128xf32>,
    %c5_i32 = arith.constant 5 : i32
    %215 = arith.index_cast %c5_i32 : i32 to index
    %c0_77 = arith.constant 0 : index
    %c0_78 = arith.constant 0 : index
    %216 = vector.load %arg10[%215, %c0_77, %c0_78] : memref<8x8x384xf32, #tpu.memory_space<vmem>>, vector<1x8x384xf32>
    %217 = vector.shape_cast %216 : vector<1x8x384xf32> to vector<8x384xf32>
    %cst_79 = arith.constant dense<0.000000e+00> : vector<8x384xf32>
    %218 = tpu.matmul %210, %12, %cst_79 {dimension_numbers = #tpu.dot_dimension_numbers<[1], [0], [0], [1], [0, 0, 1, 1], [], []>} : vector<8x128xf32>, vector<128x384xf32>, vector<8x384xf32> -> vector<8x384xf32>
    %219 = vector.extract_strided_slice %217 {offsets = [0, 0], sizes = [8, 128], strides = [1, 1]} : vector<8x384xf32> to vector<8x128xf32>
    %220 = vector.extract_strided_slice %218 {offsets = [0, 0], sizes = [8, 128], strides = [1, 1]} : vector<8x384xf32> to vector<8x128xf32>
    %221 = arith.addf %219, %220 : vector<8x128xf32>
    %cst_80 = arith.constant 5.000000e-01 : f32
    %222 = vector.broadcast %cst_80 : f32 to vector<8x128xf32>
    %223 = arith.mulf %222, %221 : vector<8x128xf32>
    %224 = math.tanh %223 : vector<8x128xf32>
    %cst_81 = arith.constant 5.000000e-01 : f32
    %225 = vector.broadcast %cst_81 : f32 to vector<8x128xf32>
    %226 = arith.mulf %225, %224 : vector<8x128xf32>
    %cst_82 = arith.constant 5.000000e-01 : f32
    %227 = vector.broadcast %cst_82 : f32 to vector<8x128xf32>
    %228 = arith.addf %226, %227 : vector<8x128xf32>
    %229 = vector.extract_strided_slice %217 {offsets = [0, 128], sizes = [8, 128], strides = [1, 1]} : vector<8x384xf32> to vector<8x128xf32>
    %230 = vector.extract_strided_slice %218 {offsets = [0, 128], sizes = [8, 128], strides = [1, 1]} : vector<8x384xf32> to vector<8x128xf32>
    %231 = arith.addf %229, %230 : vector<8x128xf32>
    %cst_83 = arith.constant 5.000000e-01 : f32
    %232 = vector.broadcast %cst_83 : f32 to vector<8x128xf32>
    %233 = arith.mulf %232, %231 : vector<8x128xf32>
    %234 = math.tanh %233 : vector<8x128xf32>
    %cst_84 = arith.constant 5.000000e-01 : f32
    %235 = vector.broadcast %cst_84 : f32 to vector<8x128xf32>
    %236 = arith.mulf %235, %234 : vector<8x128xf32>
    %cst_85 = arith.constant 5.000000e-01 : f32
    %237 = vector.broadcast %cst_85 : f32 to vector<8x128xf32>
    %238 = arith.addf %236, %237 : vector<8x128xf32>
    %239 = vector.extract_strided_slice %217 {offsets = [0, 256], sizes = [8, 128], strides = [1, 1]} : vector<8x384xf32> to vector<8x128xf32>
    %240 = vector.extract_strided_slice %218 {offsets = [0, 256], sizes = [8, 128], strides = [1, 1]} : vector<8x384xf32> to vector<8x128xf32>
    %241 = vector.broadcast %13 : vector<1x128xf32> to vector<8x128xf32>
    %242 = arith.addf %240, %241 : vector<8x128xf32>
    %243 = arith.mulf %228, %242 : vector<8x128xf32>
    %244 = arith.addf %239, %243 : vector<8x128xf32>
    %245 = math.tanh %244 : vector<8x128xf32>
    %cst_86 = arith.constant 1.000000e+00 : f32
    %246 = vector.broadcast %cst_86 : f32 to vector<8x128xf32>
    %247 = arith.subf %246, %238 : vector<8x128xf32>
    %248 = arith.mulf %247, %245 : vector<8x128xf32>
    %249 = arith.mulf %238, %210 : vector<8x128xf32>
    %250 = arith.addf %248, %249 : vector<8x128xf32>
    %251 = arith.index_cast %c5_i32 : i32 to index
    %c0_87 = arith.constant 0 : index
    %c0_88 = arith.constant 0 : index
    %252 = vector.load %arg7[%251, %c0_87, %c0_88] : memref<8x8x128xf32, #tpu.memory_space<vmem>>, vector<1x8x128xf32>
    %253 = vector.shape_cast %252 : vector<1x8x128xf32> to vector<8x128xf32>
    %254 = vector.shape_cast %250 : vector<8x128xf32> to vector<1x8x128xf32>
    tpu.vector_store %arg7[%251, %c0_87, %c0_88], %254 {strides = array<i32>} : memref<8x8x128xf32, #tpu.memory_space<vmem>>, vector<1x8x128xf32>,
    %c6_i32 = arith.constant 6 : i32
    %255 = arith.index_cast %c6_i32 : i32 to index
    %c0_89 = arith.constant 0 : index
    %c0_90 = arith.constant 0 : index
    %256 = vector.load %arg10[%255, %c0_89, %c0_90] : memref<8x8x384xf32, #tpu.memory_space<vmem>>, vector<1x8x384xf32>
    %257 = vector.shape_cast %256 : vector<1x8x384xf32> to vector<8x384xf32>
    %cst_91 = arith.constant dense<0.000000e+00> : vector<8x384xf32>
    %258 = tpu.matmul %250, %12, %cst_91 {dimension_numbers = #tpu.dot_dimension_numbers<[1], [0], [0], [1], [0, 0, 1, 1], [], []>} : vector<8x128xf32>, vector<128x384xf32>, vector<8x384xf32> -> vector<8x384xf32>
    %259 = vector.extract_strided_slice %257 {offsets = [0, 0], sizes = [8, 128], strides = [1, 1]} : vector<8x384xf32> to vector<8x128xf32>
    %260 = vector.extract_strided_slice %258 {offsets = [0, 0], sizes = [8, 128], strides = [1, 1]} : vector<8x384xf32> to vector<8x128xf32>
    %261 = arith.addf %259, %260 : vector<8x128xf32>
    %cst_92 = arith.constant 5.000000e-01 : f32
    %262 = vector.broadcast %cst_92 : f32 to vector<8x128xf32>
    %263 = arith.mulf %262, %261 : vector<8x128xf32>
    %264 = math.tanh %263 : vector<8x128xf32>
    %cst_93 = arith.constant 5.000000e-01 : f32
    %265 = vector.broadcast %cst_93 : f32 to vector<8x128xf32>
    %266 = arith.mulf %265, %264 : vector<8x128xf32>
    %cst_94 = arith.constant 5.000000e-01 : f32
    %267 = vector.broadcast %cst_94 : f32 to vector<8x128xf32>
    %268 = arith.addf %266, %267 : vector<8x128xf32>
    %269 = vector.extract_strided_slice %257 {offsets = [0, 128], sizes = [8, 128], strides = [1, 1]} : vector<8x384xf32> to vector<8x128xf32>
    %270 = vector.extract_strided_slice %258 {offsets = [0, 128], sizes = [8, 128], strides = [1, 1]} : vector<8x384xf32> to vector<8x128xf32>
    %271 = arith.addf %269, %270 : vector<8x128xf32>
    %cst_95 = arith.constant 5.000000e-01 : f32
    %272 = vector.broadcast %cst_95 : f32 to vector<8x128xf32>
    %273 = arith.mulf %272, %271 : vector<8x128xf32>
    %274 = math.tanh %273 : vector<8x128xf32>
    %cst_96 = arith.constant 5.000000e-01 : f32
    %275 = vector.broadcast %cst_96 : f32 to vector<8x128xf32>
    %276 = arith.mulf %275, %274 : vector<8x128xf32>
    %cst_97 = arith.constant 5.000000e-01 : f32
    %277 = vector.broadcast %cst_97 : f32 to vector<8x128xf32>
    %278 = arith.addf %276, %277 : vector<8x128xf32>
    %279 = vector.extract_strided_slice %257 {offsets = [0, 256], sizes = [8, 128], strides = [1, 1]} : vector<8x384xf32> to vector<8x128xf32>
    %280 = vector.extract_strided_slice %258 {offsets = [0, 256], sizes = [8, 128], strides = [1, 1]} : vector<8x384xf32> to vector<8x128xf32>
    %281 = vector.broadcast %13 : vector<1x128xf32> to vector<8x128xf32>
    %282 = arith.addf %280, %281 : vector<8x128xf32>
    %283 = arith.mulf %268, %282 : vector<8x128xf32>
    %284 = arith.addf %279, %283 : vector<8x128xf32>
    %285 = math.tanh %284 : vector<8x128xf32>
    %cst_98 = arith.constant 1.000000e+00 : f32
    %286 = vector.broadcast %cst_98 : f32 to vector<8x128xf32>
    %287 = arith.subf %286, %278 : vector<8x128xf32>
    %288 = arith.mulf %287, %285 : vector<8x128xf32>
    %289 = arith.mulf %278, %250 : vector<8x128xf32>
    %290 = arith.addf %288, %289 : vector<8x128xf32>
    %291 = arith.index_cast %c6_i32 : i32 to index
    %c0_99 = arith.constant 0 : index
    %c0_100 = arith.constant 0 : index
    %292 = vector.load %arg7[%291, %c0_99, %c0_100] : memref<8x8x128xf32, #tpu.memory_space<vmem>>, vector<1x8x128xf32>
    %293 = vector.shape_cast %292 : vector<1x8x128xf32> to vector<8x128xf32>
    %294 = vector.shape_cast %290 : vector<8x128xf32> to vector<1x8x128xf32>
    tpu.vector_store %arg7[%291, %c0_99, %c0_100], %294 {strides = array<i32>} : memref<8x8x128xf32, #tpu.memory_space<vmem>>, vector<1x8x128xf32>,
    %c7_i32 = arith.constant 7 : i32
    %295 = arith.index_cast %c7_i32 : i32 to index
    %c0_101 = arith.constant 0 : index
    %c0_102 = arith.constant 0 : index
    %296 = vector.load %arg10[%295, %c0_101, %c0_102] : memref<8x8x384xf32, #tpu.memory_space<vmem>>, vector<1x8x384xf32>
    %297 = vector.shape_cast %296 : vector<1x8x384xf32> to vector<8x384xf32>
    %cst_103 = arith.constant dense<0.000000e+00> : vector<8x384xf32>
    %298 = tpu.matmul %290, %12, %cst_103 {dimension_numbers = #tpu.dot_dimension_numbers<[1], [0], [0], [1], [0, 0, 1, 1], [], []>} : vector<8x128xf32>, vector<128x384xf32>, vector<8x384xf32> -> vector<8x384xf32>
    %299 = vector.extract_strided_slice %297 {offsets = [0, 0], sizes = [8, 128], strides = [1, 1]} : vector<8x384xf32> to vector<8x128xf32>
    %300 = vector.extract_strided_slice %298 {offsets = [0, 0], sizes = [8, 128], strides = [1, 1]} : vector<8x384xf32> to vector<8x128xf32>
    %301 = arith.addf %299, %300 : vector<8x128xf32>
    %cst_104 = arith.constant 5.000000e-01 : f32
    %302 = vector.broadcast %cst_104 : f32 to vector<8x128xf32>
    %303 = arith.mulf %302, %301 : vector<8x128xf32>
    %304 = math.tanh %303 : vector<8x128xf32>
    %cst_105 = arith.constant 5.000000e-01 : f32
    %305 = vector.broadcast %cst_105 : f32 to vector<8x128xf32>
    %306 = arith.mulf %305, %304 : vector<8x128xf32>
    %cst_106 = arith.constant 5.000000e-01 : f32
    %307 = vector.broadcast %cst_106 : f32 to vector<8x128xf32>
    %308 = arith.addf %306, %307 : vector<8x128xf32>
    %309 = vector.extract_strided_slice %297 {offsets = [0, 128], sizes = [8, 128], strides = [1, 1]} : vector<8x384xf32> to vector<8x128xf32>
    %310 = vector.extract_strided_slice %298 {offsets = [0, 128], sizes = [8, 128], strides = [1, 1]} : vector<8x384xf32> to vector<8x128xf32>
    %311 = arith.addf %309, %310 : vector<8x128xf32>
    %cst_107 = arith.constant 5.000000e-01 : f32
    %312 = vector.broadcast %cst_107 : f32 to vector<8x128xf32>
    %313 = arith.mulf %312, %311 : vector<8x128xf32>
    %314 = math.tanh %313 : vector<8x128xf32>
    %cst_108 = arith.constant 5.000000e-01 : f32
    %315 = vector.broadcast %cst_108 : f32 to vector<8x128xf32>
    %316 = arith.mulf %315, %314 : vector<8x128xf32>
    %cst_109 = arith.constant 5.000000e-01 : f32
    %317 = vector.broadcast %cst_109 : f32 to vector<8x128xf32>
    %318 = arith.addf %316, %317 : vector<8x128xf32>
    %319 = vector.extract_strided_slice %297 {offsets = [0, 256], sizes = [8, 128], strides = [1, 1]} : vector<8x384xf32> to vector<8x128xf32>
    %320 = vector.extract_strided_slice %298 {offsets = [0, 256], sizes = [8, 128], strides = [1, 1]} : vector<8x384xf32> to vector<8x128xf32>
    %321 = vector.broadcast %13 : vector<1x128xf32> to vector<8x128xf32>
    %322 = arith.addf %320, %321 : vector<8x128xf32>
    %323 = arith.mulf %308, %322 : vector<8x128xf32>
    %324 = arith.addf %319, %323 : vector<8x128xf32>
    %325 = math.tanh %324 : vector<8x128xf32>
    %cst_110 = arith.constant 1.000000e+00 : f32
    %326 = vector.broadcast %cst_110 : f32 to vector<8x128xf32>
    %327 = arith.subf %326, %318 : vector<8x128xf32>
    %328 = arith.mulf %327, %325 : vector<8x128xf32>
    %329 = arith.mulf %318, %290 : vector<8x128xf32>
    %330 = arith.addf %328, %329 : vector<8x128xf32>
    %331 = arith.index_cast %c7_i32 : i32 to index
    %c0_111 = arith.constant 0 : index
    %c0_112 = arith.constant 0 : index
    %332 = vector.load %arg7[%331, %c0_111, %c0_112] : memref<8x8x128xf32, #tpu.memory_space<vmem>>, vector<1x8x128xf32>
    %333 = vector.shape_cast %332 : vector<1x8x128xf32> to vector<8x128xf32>
    %334 = vector.shape_cast %330 : vector<8x128xf32> to vector<1x8x128xf32>
    tpu.vector_store %arg7[%331, %c0_111, %c0_112], %334 {strides = array<i32>} : memref<8x8x128xf32, #tpu.memory_space<vmem>>, vector<1x8x128xf32>,
    %c8_i32 = arith.constant 8 : i32
    %c0_113 = arith.constant 0 : index
    %c0_114 = arith.constant 0 : index
    %335 = vector.load %arg9[%c0_113, %c0_114] : memref<8x128xf32, #tpu.memory_space<vmem>>, vector<8x128xf32>
    tpu.vector_store %arg9[%c0_113, %c0_114], %330 {strides = array<i32>} : memref<8x128xf32, #tpu.memory_space<vmem>>, vector<8x128xf32>,
    %c0_115 = arith.constant 0 : index
    %c0_116 = arith.constant 0 : index
    %336 = vector.load %arg8[%c0_115, %c0_116] : memref<8x128xf32, #tpu.memory_space<vmem>>, vector<8x128xf32>
    tpu.vector_store %arg8[%c0_115, %c0_116], %330 {strides = array<i32>} : memref<8x128xf32, #tpu.memory_space<vmem>>, vector<8x128xf32>,
    return
  }
  func.func @transform_0(%arg0: i32, %arg1: i32) -> (i32, i32, i32) {
    %c0_i32 = arith.constant 0 : i32
    %c0_i32_0 = arith.constant 0 : i32
    return %arg1, %arg0, %c0_i32 : i32, i32, i32
  }
  func.func @transform_1(%arg0: i32, %arg1: i32) -> (i32, i32) {
    %c0_i32 = arith.constant 0 : i32
    %c0_i32_0 = arith.constant 0 : i32
    %c0_i32_1 = arith.constant 0 : i32
    return %c0_i32, %c0_i32_0 : i32, i32
  }
  func.func @transform_2(%arg0: i32, %arg1: i32) -> (i32, i32) {
    %c0_i32 = arith.constant 0 : i32
    %c0_i32_0 = arith.constant 0 : i32
    %c0_i32_1 = arith.constant 0 : i32
    return %c0_i32, %c0_i32_0 : i32, i32
  }
  func.func @transform_3(%arg0: i32, %arg1: i32) -> (i32, i32) {
    %c0_i32 = arith.constant 0 : i32
    %c0_i32_0 = arith.constant 0 : i32
    %c0_i32_1 = arith.constant 0 : i32
    return %c0_i32, %c0_i32_0 : i32, i32
  }
  func.func @transform_4(%arg0: i32, %arg1: i32) -> (i32, i32) {
    %c0_i32 = arith.constant 0 : i32
    %c0_i32_0 = arith.constant 0 : i32
    %c0_i32_1 = arith.constant 0 : i32
    return %c0_i32, %c0_i32_0 : i32, i32
  }
  func.func @transform_5(%arg0: i32, %arg1: i32) -> (i32, i32, i32) {
    %c0_i32 = arith.constant 0 : i32
    %c0_i32_0 = arith.constant 0 : i32
    return %arg1, %arg0, %c0_i32 : i32, i32, i32
  }
  func.func @transform_6(%arg0: i32, %arg1: i32) -> (i32, i32) {
    %c0_i32 = arith.constant 0 : i32
    %c0_i32_0 = arith.constant 0 : i32
    return %arg0, %c0_i32 : i32, i32
  }
}

</mosaic_0001>

<llo_original>
// kernel: seq2seq_encoder_forward.2
$region0: #{seq2seq_encoder_forward.2}
  #allocation0 [shape = 'u32[]', space=smem, size = 0x4, offset = 0x4, fixed_abs, tag = 'smem constant byte address 0x4 - core index']
  #allocation1 [shape = 'u32[72,128]{1,0:T(1,128)}', space=vmem, size = 0x9000, scoped, tag = 'internal scratch']
  #allocation2 [shape = 'f32[8,128]{1,0:T(8,128)}', space=vmem, size = 0x1000, scoped, tag = 'scratch operand']
  #allocation3 [shape = 'f32[8,8,384]{2,1,0:T(8,128)}', space=vmem, size = 0x18000, scoped, tag = 'scratch operand']
  %s0 = inlined_call_operand.vmem [shape: f32[8,8,128], index: 0, kind: input, shape index: {}]
  %s1 = inlined_call_operand.hbm [shape: f32[128,384], index: 1, kind: input, shape index: {}]
  %s2 = inlined_call_operand.hbm [shape: f32[128,384], index: 2, kind: input, shape index: {}]
  %s3 = inlined_call_operand.vmem [shape: f32[1,384], index: 3, kind: input, shape index: {}]
  %s4 = inlined_call_operand.vmem [shape: f32[1,128], index: 4, kind: input, shape index: {}]
  %s5 = inlined_call_operand.vmem [shape: f32[8,8,128], index: 5, kind: output, shape index: {0}]
  %s6 = inlined_call_operand.vmem [shape: f32[8,128], index: 6, kind: output, shape index: {1}]
  %7 = xla_tuple %s5, %s6
  %s8 = sld [smem:[#allocation0]]
  $region50: #{seq2seq_encoder_forward.2} parent=0
    _
  %s10 = ssub.s32 1, %s8
  %s11 = scalar_select 0, %s10, %s8
  $region1: #{seq2seq_encoder_forward.2} parent=0
    #allocation4 [shape = 'u8[196608]{0}', space=vmem, size = 0x30000, scoped, tag = 'input window, operand 1, single buffered']
    #allocation5 [shape = 's32[1]{0}', space=sflag, size = 0x4, scoped, tag = 'scoped memory for seq2seq_encoder_forward.2']
    #allocation6 [shape = 'u8[196608]{0}', space=vmem, size = 0x30000, scoped, tag = 'input window, operand 2, single buffered']
    #allocation7 [shape = 's32[1]{0}', space=sflag, size = 0x4, scoped, tag = 'scoped memory for seq2seq_encoder_forward.2']
    %12 = vsyncpa [#allocation5], 0
    %13 = vsyncpa [#allocation7], 0
    // Predicated region
    $region2: #{seq2seq_encoder_forward.2} parent=1 // pred_check
      _
    $region3: #{seq2seq_encoder_forward.2} parent=1 // pred_check_branch
      %15 = sbr.rel (0) target = $region5
    $region4: #{seq2seq_encoder_forward.2} parent=1 // pred_region
      _
    $region5: #{seq2seq_encoder_forward.2} parent=1 // pred_fallthru
      _
    // Predicated region
    $region6: #{seq2seq_encoder_forward.2} parent=1 // pred_check
      _
    $region7: #{seq2seq_encoder_forward.2} parent=1 // pred_check_branch
      %17 = sbr.rel (0) target = $region9
    $region8: #{seq2seq_encoder_forward.2} parent=1 // pred_region
      %19 = vsyncadd [#allocation5], 0
      %s20 = sshll.u32 %s1, 4
      %s21 = int_to_ptr.hbm [resolvable:$true] %s20
      %s22 = sshll.u32 [#allocation4], 4
      %s23 = int_to_ptr.vmem [resolvable:$true] %s22
      %28 = dma.hbm_to_vmem [thread:$0]  %s21, 6144, %s23, [#allocation5], 384, 384, 24
    $region9: #{seq2seq_encoder_forward.2} parent=1 // pred_fallthru
      _
    // Predicated region
    $region10: #{seq2seq_encoder_forward.2} parent=1 // pred_check
      _
    $region11: #{seq2seq_encoder_forward.2} parent=1 // pred_check_branch
      %30 = sbr.rel (0) target = $region13
    $region12: #{seq2seq_encoder_forward.2} parent=1 // pred_region
      %32 = vsyncadd [#allocation7], 0
      %s33 = sshll.u32 %s2, 4
      %s34 = int_to_ptr.hbm [resolvable:$true] %s33
      %s35 = sshll.u32 [#allocation6], 4
      %s36 = int_to_ptr.vmem [resolvable:$true] %s35
      %41 = dma.hbm_to_vmem [thread:$0]  %s34, 6144, %s36, [#allocation7], 384, 384, 24
    $region13: #{seq2seq_encoder_forward.2} parent=1 // pred_fallthru
      _
    // Predicated region
    $region14: #{seq2seq_encoder_forward.2} parent=1 // pred_check
      _
    $region15: #{seq2seq_encoder_forward.2} parent=1 // pred_check_branch
      %43 = sbr.rel (0) target = $region17
    $region16: #{seq2seq_encoder_forward.2} parent=1 // pred_region
      _
    $region17: #{seq2seq_encoder_forward.2} parent=1 // pred_fallthru
      _
    // Predicated region
    $region18: #{seq2seq_encoder_forward.2} parent=1 // pred_check
      _
    $region19: #{seq2seq_encoder_forward.2} parent=1 // pred_check_branch
      %45 = sbr.rel (0) target = $region21
    $region20: #{seq2seq_encoder_forward.2} parent=1 // pred_region
      _
    $region21: #{seq2seq_encoder_forward.2} parent=1 // pred_fallthru
      _
    // Predicated region
    $region22: #{seq2seq_encoder_forward.2} parent=1 // pred_check
      _
    $region23: #{seq2seq_encoder_forward.2} parent=1 // pred_check_branch
      %47 = sbr.rel (0) target = $region25
    $region24: #{seq2seq_encoder_forward.2} parent=1 // pred_region
      %49 = dma.done [#allocation5], 6144
    $region25: #{seq2seq_encoder_forward.2} parent=1 // pred_fallthru
      _
    // Predicated region
    $region26: #{seq2seq_encoder_forward.2} parent=1 // pred_check
      _
    $region27: #{seq2seq_encoder_forward.2} parent=1 // pred_check_branch
      %51 = sbr.rel (0) target = $region29
    $region28: #{seq2seq_encoder_forward.2} parent=1 // pred_region
      %53 = dma.done [#allocation7], 6144
    $region29: #{seq2seq_encoder_forward.2} parent=1 // pred_fallthru
      _
    %p54 = scmp.eq.s32.totalorder 0, 0
    // Predicated region
    $region30: #{seq2seq_encoder_forward.2} parent=1 // pred_check
      %p55 = pneg %p54
    $region31: #{seq2seq_encoder_forward.2} parent=1 // pred_check_branch
      %57 = sbr.rel (%p55) target = $region33
    $region32: #{seq2seq_encoder_forward.2} parent=1 // pred_region
      %58 = vst [vmem:[#allocation2] sm:$0xff] 0.0
    $region33: #{seq2seq_encoder_forward.2} parent=1 // pred_fallthru
      _
    %v59 = vld [vmem:[%s0] sm:$0xff]
    %v60 = vld [vmem:[%s0 + $0x8] sm:$0xff]
    %v61 = vld [vmem:[%s0 + $0x10] sm:$0xff]
    %v62 = vld [vmem:[%s0 + $0x18] sm:$0xff]
    %v63 = vld [vmem:[%s0 + $0x20] sm:$0xff]
    %v64 = vld [vmem:[%s0 + $0x28] sm:$0xff]
    %v65 = vld [vmem:[%s0 + $0x30] sm:$0xff]
    %v66 = vld [vmem:[%s0 + $0x38] sm:$0xff]
    %v67 = vld [vmem:[#allocation4] sm:$0xff]
    %v68 = vld [vmem:[#allocation4 + $0x8] sm:$0xff]
    %v69 = vld [vmem:[#allocation4 + $0x10] sm:$0xff]
    %v70 = vld [vmem:[#allocation4 + $0x18] sm:$0xff]
    %v71 = vld [vmem:[#allocation4 + $0x20] sm:$0xff]
    %v72 = vld [vmem:[#allocation4 + $0x28] sm:$0xff]
    %v73 = vld [vmem:[#allocation4 + $0x30] sm:$0xff]
    %v74 = vld [vmem:[#allocation4 + $0x38] sm:$0xff]
    %v75 = vld [vmem:[#allocation4 + $0x40] sm:$0xff]
    %v76 = vld [vmem:[#allocation4 + $0x48] sm:$0xff]
    %v77 = vld [vmem:[#allocation4 + $0x50] sm:$0xff]
    %v78 = vld [vmem:[#allocation4 + $0x58] sm:$0xff]
    %v79 = vld [vmem:[#allocation4 + $0x60] sm:$0xff]
    %v80 = vld [vmem:[#allocation4 + $0x68] sm:$0xff]
    %v81 = vld [vmem:[#allocation4 + $0x70] sm:$0xff]
    %v82 = vld [vmem:[#allocation4 + $0x78] sm:$0xff]
    %v83 = vld [vmem:[#allocation4 + $0x80] sm:$0xff]
    %v84 = vld [vmem:[#allocation4 + $0x88] sm:$0xff]
    %v85 = vld [vmem:[#allocation4 + $0x90] sm:$0xff]
    %v86 = vld [vmem:[#allocation4 + $0x98] sm:$0xff]
    %v87 = vld [vmem:[#allocation4 + $0xa0] sm:$0xff]
    %v88 = vld [vmem:[#allocation4 + $0xa8] sm:$0xff]
    %v89 = vld [vmem:[#allocation4 + $0xb0] sm:$0xff]
    %v90 = vld [vmem:[#allocation4 + $0xb8] sm:$0xff]
    %v91 = vld [vmem:[#allocation4 + $0xc0] sm:$0xff]
    %v92 = vld [vmem:[#allocation4 + $0xc8] sm:$0xff]
    %v93 = vld [vmem:[#allocation4 + $0xd0] sm:$0xff]
    %v94 = vld [vmem:[#allocation4 + $0xd8] sm:$0xff]
    %v95 = vld [vmem:[#allocation4 + $0xe0] sm:$0xff]
    %v96 = vld [vmem:[#allocation4 + $0xe8] sm:$0xff]
    %v97 = vld [vmem:[#allocation4 + $0xf0] sm:$0xff]
    %v98 = vld [vmem:[#allocation4 + $0xf8] sm:$0xff]
    %v99 = vld [vmem:[#allocation4 + $0x100] sm:$0xff]
    %v100 = vld [vmem:[#allocation4 + $0x108] sm:$0xff]
    %v101 = vld [vmem:[#allocation4 + $0x110] sm:$0xff]
    %v102 = vld [vmem:[#allocation4 + $0x118] sm:$0xff]
    %v103 = vld [vmem:[#allocation4 + $0x120] sm:$0xff]
    %v104 = vld [vmem:[#allocation4 + $0x128] sm:$0xff]
    %v105 = vld [vmem:[#allocation4 + $0x130] sm:$0xff]
    %v106 = vld [vmem:[#allocation4 + $0x138] sm:$0xff]
    %v107 = vld [vmem:[#allocation4 + $0x140] sm:$0xff]
    %v108 = vld [vmem:[#allocation4 + $0x148] sm:$0xff]
    %v109 = vld [vmem:[#allocation4 + $0x150] sm:$0xff]
    %v110 = vld [vmem:[#allocation4 + $0x158] sm:$0xff]
    %v111 = vld [vmem:[#allocation4 + $0x160] sm:$0xff]
    %v112 = vld [vmem:[#allocation4 + $0x168] sm:$0xff]
    %v113 = vld [vmem:[#allocation4 + $0x170] sm:$0xff]
    %v114 = vld [vmem:[#allocation4 + $0x178] sm:$0xff]
    %v115 = vld [vmem:[%s3] sm:$0x7]
    %v117 = vperm.slane %v115, 0
    %v118 = vperm.slane %v115, 1
    %v119 = vperm.slane %v115, 2
    %123 = vmatpush.msra.mxu0 %v112
    %124 = vmatpush.msra.mxu0 %v109
    %125 = vmatpush.msra.mxu0 %v106
    %126 = vmatpush.msra.mxu0 %v103
    %127 = vmatpush.msra.mxu0 %v100
    %128 = vmatpush.msra.mxu0 %v97
    %129 = vmatpush.msra.mxu0 %v94
    %130 = vmatpush.msra.mxu0 %v91
    %131 = vmatpush.msra.mxu0 %v88
    %132 = vmatpush.msra.mxu0 %v85
    %133 = vmatpush.msra.mxu0 %v82
    %134 = vmatpush.msra.mxu0 %v79
    %135 = vmatpush.msra.mxu0 %v76
    %136 = vmatpush.msra.mxu0 %v73
    %137 = vmatpush.msra.mxu0 %v70
    %138 = vmatpush.msra.mxu0 %v67
    %139 = vmatmul.f32.gmra.mxu0 %v59
    %v140 = vpop.f32.mrf.mxu0
    %v141 = vadd.f32 %v117, %v140
    %142 = vmatmul.f32.gmra.mxu0 %v60
    %v143 = vpop.f32.mrf.mxu0
    %v144 = vadd.f32 %v117, %v143
    %145 = vmatmul.f32.gmra.mxu0 %v61
    %v146 = vpop.f32.mrf.mxu0
    %v147 = vadd.f32 %v117, %v146
    %148 = vmatmul.f32.gmra.mxu0 %v62
    %v149 = vpop.f32.mrf.mxu0
    %v150 = vadd.f32 %v117, %v149
    %151 = vmatmul.f32.gmra.mxu0 %v63
    %v152 = vpop.f32.mrf.mxu0
    %v153 = vadd.f32 %v117, %v152
    %154 = vmatmul.f32.gmra.mxu0 %v64
    %v155 = vpop.f32.mrf.mxu0
    %v156 = vadd.f32 %v117, %v155
    %157 = vmatmul.f32.gmra.mxu0 %v65
    %v158 = vpop.f32.mrf.mxu0
    %v159 = vadd.f32 %v117, %v158
    %160 = vmatmul.f32.gmra.mxu0 %v66
    %v161 = vpop.f32.mrf.mxu0
    %v162 = vadd.f32 %v117, %v161
    %163 = vdwg.mxu0
    %164 = vmatpush.msra.mxu0 %v113
    %165 = vmatpush.msra.mxu0 %v110
    %166 = vmatpush.msra.mxu0 %v107
    %167 = vmatpush.msra.mxu0 %v104
    %168 = vmatpush.msra.mxu0 %v101
    %169 = vmatpush.msra.mxu0 %v98
    %170 = vmatpush.msra.mxu0 %v95
    %171 = vmatpush.msra.mxu0 %v92
    %172 = vmatpush.msra.mxu0 %v89
    %173 = vmatpush.msra.mxu0 %v86
    %174 = vmatpush.msra.mxu0 %v83
    %175 = vmatpush.msra.mxu0 %v80
    %176 = vmatpush.msra.mxu0 %v77
    %177 = vmatpush.msra.mxu0 %v74
    %178 = vmatpush.msra.mxu0 %v71
    %179 = vmatpush.msra.mxu0 %v68
    %180 = vmatmul.f32.gmra.mxu0 %v59
    %v181 = vpop.f32.mrf.mxu0
    %v182 = vadd.f32 %v118, %v181
    %183 = vmatmul.f32.gmra.mxu0 %v60
    %v184 = vpop.f32.mrf.mxu0
    %v185 = vadd.f32 %v118, %v184
    %186 = vmatmul.f32.gmra.mxu0 %v61
    %v187 = vpop.f32.mrf.mxu0
    %v188 = vadd.f32 %v118, %v187
    %189 = vmatmul.f32.gmra.mxu0 %v62
    %v190 = vpop.f32.mrf.mxu0
    %v191 = vadd.f32 %v118, %v190
    %192 = vmatmul.f32.gmra.mxu0 %v63
    %v193 = vpop.f32.mrf.mxu0
    %v194 = vadd.f32 %v118, %v193
    %195 = vmatmul.f32.gmra.mxu0 %v64
    %v196 = vpop.f32.mrf.mxu0
    %v197 = vadd.f32 %v118, %v196
    %198 = vmatmul.f32.gmra.mxu0 %v65
    %v199 = vpop.f32.mrf.mxu0
    %v200 = vadd.f32 %v118, %v199
    %201 = vmatmul.f32.gmra.mxu0 %v66
    %v202 = vpop.f32.mrf.mxu0
    %v203 = vadd.f32 %v118, %v202
    %204 = vdwg.mxu0
    %205 = vmatpush.msra.mxu0 %v114
    %206 = vmatpush.msra.mxu0 %v111
    %207 = vmatpush.msra.mxu0 %v108
    %208 = vmatpush.msra.mxu0 %v105
    %209 = vmatpush.msra.mxu0 %v102
    %210 = vmatpush.msra.mxu0 %v99
    %211 = vmatpush.msra.mxu0 %v96
    %212 = vmatpush.msra.mxu0 %v93
    %213 = vmatpush.msra.mxu0 %v90
    %214 = vmatpush.msra.mxu0 %v87
    %215 = vmatpush.msra.mxu0 %v84
    %216 = vmatpush.msra.mxu0 %v81
    %217 = vmatpush.msra.mxu0 %v78
    %218 = vmatpush.msra.mxu0 %v75
    %219 = vmatpush.msra.mxu0 %v72
    %220 = vmatpush.msra.mxu0 %v69
    %221 = vmatmul.f32.gmra.mxu0 %v59
    %v222 = vpop.f32.mrf.mxu0
    %v223 = vadd.f32 %v119, %v222
    %224 = vmatmul.f32.gmra.mxu0 %v60
    %v225 = vpop.f32.mrf.mxu0
    %v226 = vadd.f32 %v119, %v225
    %227 = vmatmul.f32.gmra.mxu0 %v61
    %v228 = vpop.f32.mrf.mxu0
    %v229 = vadd.f32 %v119, %v228
    %230 = vmatmul.f32.gmra.mxu0 %v62
    %v231 = vpop.f32.mrf.mxu0
    %v232 = vadd.f32 %v119, %v231
    %233 = vmatmul.f32.gmra.mxu0 %v63
    %v234 = vpop.f32.mrf.mxu0
    %v235 = vadd.f32 %v119, %v234
    %236 = vmatmul.f32.gmra.mxu0 %v64
    %v237 = vpop.f32.mrf.mxu0
    %v238 = vadd.f32 %v119, %v237
    %239 = vmatmul.f32.gmra.mxu0 %v65
    %v240 = vpop.f32.mrf.mxu0
    %v241 = vadd.f32 %v119, %v240
    %242 = vmatmul.f32.gmra.mxu0 %v66
    %v243 = vpop.f32.mrf.mxu0
    %v244 = vadd.f32 %v119, %v243
    %245 = vdwg.mxu0
    %246 = vst [vmem:[#allocation3] sm:$0xff] %v141
    %247 = vst [vmem:[#allocation3 + $0x8] sm:$0xff] %v182
    %248 = vst [vmem:[#allocation3 + $0x10] sm:$0xff] %v223
    %249 = vst [vmem:[#allocation3 + $0x18] sm:$0xff] %v144
    %250 = vst [vmem:[#allocation3 + $0x20] sm:$0xff] %v185
    %251 = vst [vmem:[#allocation3 + $0x28] sm:$0xff] %v226
    %252 = vst [vmem:[#allocation3 + $0x30] sm:$0xff] %v147
    %253 = vst [vmem:[#allocation3 + $0x38] sm:$0xff] %v188
    %254 = vst [vmem:[#allocation3 + $0x40] sm:$0xff] %v229
    %255 = vst [vmem:[#allocation3 + $0x48] sm:$0xff] %v150
    %256 = vst [vmem:[#allocation3 + $0x50] sm:$0xff] %v191
    %257 = vst [vmem:[#allocation3 + $0x58] sm:$0xff] %v232
    %258 = vst [vmem:[#allocation3 + $0x60] sm:$0xff] %v153
    %259 = vst [vmem:[#allocation3 + $0x68] sm:$0xff] %v194
    %260 = vst [vmem:[#allocation3 + $0x70] sm:$0xff] %v235
    %261 = vst [vmem:[#allocation3 + $0x78] sm:$0xff] %v156
    %262 = vst [vmem:[#allocation3 + $0x80] sm:$0xff] %v197
    %263 = vst [vmem:[#allocation3 + $0x88] sm:$0xff] %v238
    %264 = vst [vmem:[#allocation3 + $0x90] sm:$0xff] %v159
    %265 = vst [vmem:[#allocation3 + $0x98] sm:$0xff] %v200
    %266 = vst [vmem:[#allocation3 + $0xa0] sm:$0xff] %v241
    %267 = vst [vmem:[#allocation3 + $0xa8] sm:$0xff] %v162
    %268 = vst [vmem:[#allocation3 + $0xb0] sm:$0xff] %v203
    %269 = vst [vmem:[#allocation3 + $0xb8] sm:$0xff] %v244
    %v270 = vld [vmem:[#allocation6] sm:$0xff]
    %v271 = vld [vmem:[#allocation6 + $0x8] sm:$0xff]
    %v272 = vld [vmem:[#allocation6 + $0x10] sm:$0xff]
    %v273 = vld [vmem:[#allocation6 + $0x18] sm:$0xff]
    %v274 = vld [vmem:[#allocation6 + $0x20] sm:$0xff]
    %v275 = vld [vmem:[#allocation6 + $0x28] sm:$0xff]
    %v276 = vld [vmem:[#allocation6 + $0x30] sm:$0xff]
    %v277 = vld [vmem:[#allocation6 + $0x38] sm:$0xff]
    %v278 = vld [vmem:[#allocation6 + $0x40] sm:$0xff]
    %v279 = vld [vmem:[#allocation6 + $0x48] sm:$0xff]
    %v280 = vld [vmem:[#allocation6 + $0x50] sm:$0xff]
    %v281 = vld [vmem:[#allocation6 + $0x58] sm:$0xff]
    %v282 = vld [vmem:[#allocation6 + $0x60] sm:$0xff]
    %v283 = vld [vmem:[#allocation6 + $0x68] sm:$0xff]
    %v284 = vld [vmem:[#allocation6 + $0x70] sm:$0xff]
    %v285 = vld [vmem:[#allocation6 + $0x78] sm:$0xff]
    %v286 = vld [vmem:[#allocation6 + $0x80] sm:$0xff]
    %v287 = vld [vmem:[#allocation6 + $0x88] sm:$0xff]
    %v288 = vld [vmem:[#allocation6 + $0x90] sm:$0xff]
    %v289 = vld [vmem:[#allocation6 + $0x98] sm:$0xff]
    %v290 = vld [vmem:[#allocation6 + $0xa0] sm:$0xff]
    %v291 = vld [vmem:[#allocation6 + $0xa8] sm:$0xff]
    %v292 = vld [vmem:[#allocation6 + $0xb0] sm:$0xff]
    %v293 = vld [vmem:[#allocation6 + $0xb8] sm:$0xff]
    %v294 = vld [vmem:[#allocation6 + $0xc0] sm:$0xff]
    %v295 = vld [vmem:[#allocation6 + $0xc8] sm:$0xff]
    %v296 = vld [vmem:[#allocation6 + $0xd0] sm:$0xff]
    %v297 = vld [vmem:[#allocation6 + $0xd8] sm:$0xff]
    %v298 = vld [vmem:[#allocation6 + $0xe0] sm:$0xff]
    %v299 = vld [vmem:[#allocation6 + $0xe8] sm:$0xff]
    %v300 = vld [vmem:[#allocation6 + $0xf0] sm:$0xff]
    %v301 = vld [vmem:[#allocation6 + $0xf8] sm:$0xff]
    %v302 = vld [vmem:[#allocation6 + $0x100] sm:$0xff]
    %v303 = vld [vmem:[#allocation6 + $0x108] sm:$0xff]
    %v304 = vld [vmem:[#allocation6 + $0x110] sm:$0xff]
    %v305 = vld [vmem:[#allocation6 + $0x118] sm:$0xff]
    %v306 = vld [vmem:[#allocation6 + $0x120] sm:$0xff]
    %v307 = vld [vmem:[#allocation6 + $0x128] sm:$0xff]
    %v308 = vld [vmem:[#allocation6 + $0x130] sm:$0xff]
    %v309 = vld [vmem:[#allocation6 + $0x138] sm:$0xff]
    %v310 = vld [vmem:[#allocation6 + $0x140] sm:$0xff]
    %v311 = vld [vmem:[#allocation6 + $0x148] sm:$0xff]
    %v312 = vld [vmem:[#allocation6 + $0x150] sm:$0xff]
    %v313 = vld [vmem:[#allocation6 + $0x158] sm:$0xff]
    %v314 = vld [vmem:[#allocation6 + $0x160] sm:$0xff]
    %v315 = vld [vmem:[#allocation6 + $0x168] sm:$0xff]
    %v316 = vld [vmem:[#allocation6 + $0x170] sm:$0xff]
    %v317 = vld [vmem:[#allocation6 + $0x178] sm:$0xff]
    %v318 = vld [vmem:[%s4] sm:$0x1]
    %v319 = vld [vmem:[#allocation2] sm:$0xff]
    %v320 = vld [vmem:[#allocation3] sm:$0xff]
    %v321 = vld [vmem:[#allocation3 + $0x8] sm:$0xff]
    %v322 = vld [vmem:[#allocation3 + $0x10] sm:$0xff]
    %323 = vmatpush.msra.mxu0 %v315
    %324 = vmatpush.msra.mxu0 %v312
    %325 = vmatpush.msra.mxu0 %v309
    %326 = vmatpush.msra.mxu0 %v306
    %327 = vmatpush.msra.mxu0 %v303
    %328 = vmatpush.msra.mxu0 %v300
    %329 = vmatpush.msra.mxu0 %v297
    %330 = vmatpush.msra.mxu0 %v294
    %331 = vmatpush.msra.mxu0 %v291
    %332 = vmatpush.msra.mxu0 %v288
    %333 = vmatpush.msra.mxu0 %v285
    %334 = vmatpush.msra.mxu0 %v282
    %335 = vmatpush.msra.mxu0 %v279
    %336 = vmatpush.msra.mxu0 %v276
    %337 = vmatpush.msra.mxu0 %v273
    %338 = vmatpush.msra.mxu0 %v270
    %339 = vmatmul.f32.gmra.mxu0 %v319
    %v340 = vpop.f32.mrf.mxu0
    %v341 = vadd.f32 0.0, %v340
    %342 = vdwg.mxu0
    %343 = vmatpush.msra.mxu0 %v316
    %344 = vmatpush.msra.mxu0 %v313
    %345 = vmatpush.msra.mxu0 %v310
    %346 = vmatpush.msra.mxu0 %v307
    %347 = vmatpush.msra.mxu0 %v304
    %348 = vmatpush.msra.mxu0 %v301
    %349 = vmatpush.msra.mxu0 %v298
    %350 = vmatpush.msra.mxu0 %v295
    %351 = vmatpush.msra.mxu0 %v292
    %352 = vmatpush.msra.mxu0 %v289
    %353 = vmatpush.msra.mxu0 %v286
    %354 = vmatpush.msra.mxu0 %v283
    %355 = vmatpush.msra.mxu0 %v280
    %356 = vmatpush.msra.mxu0 %v277
    %357 = vmatpush.msra.mxu0 %v274
    %358 = vmatpush.msra.mxu0 %v271
    %359 = vmatmul.f32.gmra.mxu0 %v319
    %v360 = vpop.f32.mrf.mxu0
    %v361 = vadd.f32 0.0, %v360
    %362 = vdwg.mxu0
    %363 = vmatpush.msra.mxu0 %v317
    %364 = vmatpush.msra.mxu0 %v314
    %365 = vmatpush.msra.mxu0 %v311
    %366 = vmatpush.msra.mxu0 %v308
    %367 = vmatpush.msra.mxu0 %v305
    %368 = vmatpush.msra.mxu0 %v302
    %369 = vmatpush.msra.mxu0 %v299
    %370 = vmatpush.msra.mxu0 %v296
    %371 = vmatpush.msra.mxu0 %v293
    %372 = vmatpush.msra.mxu0 %v290
    %373 = vmatpush.msra.mxu0 %v287
    %374 = vmatpush.msra.mxu0 %v284
    %375 = vmatpush.msra.mxu0 %v281
    %376 = vmatpush.msra.mxu0 %v278
    %377 = vmatpush.msra.mxu0 %v275
    %378 = vmatpush.msra.mxu0 %v272
    %379 = vmatmul.f32.gmra.mxu0 %v319
    %v380 = vpop.f32.mrf.mxu0
    %v381 = vadd.f32 0.0, %v380
    %382 = vdwg.mxu0
    %v383 = vadd.f32 %v320, %v341
    %v384 = vmul.f32 %v383, 0.5
    %v385 = vtanh.pop %v384
    %v386 = vmul.f32 %v385, 0.5
    %v387 = vadd.f32 %v386, 0.5
    %v388 = vadd.f32 %v321, %v361
    %v389 = vmul.f32 %v388, 0.5
    %v390 = vtanh.pop %v389
    %v391 = vmul.f32 %v390, 0.5
    %v392 = vadd.f32 %v391, 0.5
    %v394 = vperm.slane %v318, 0
    %v396 = vadd.f32 %v381, %v394
    %v397 = vmul.f32 %v387, %v396
    %v398 = vadd.f32 %v322, %v397
    %v399 = vtanh.pop %v398
    %v400 = vsub.f32 1.0, %v392
    %v401 = vmul.f32 %v400, %v399
    %v402 = vmul.f32 %v392, %v319
    %v403 = vadd.f32 %v401, %v402
    %404 = vst [vmem:[%s5] sm:$0xff] %v403
    %s405 = scalar_lea.vmem [#allocation3], 24
    %v406 = vld [vmem:[%s405] sm:$0xff]
    %v407 = vld [vmem:[%s405 + $0x8] sm:$0xff]
    %v408 = vld [vmem:[%s405 + $0x10] sm:$0xff]
    %409 = vmatpush.msra.mxu0 %v315
    %410 = vmatpush.msra.mxu0 %v312
    %411 = vmatpush.msra.mxu0 %v309
    %412 = vmatpush.msra.mxu0 %v306
    %413 = vmatpush.msra.mxu0 %v303
    %414 = vmatpush.msra.mxu0 %v300
    %415 = vmatpush.msra.mxu0 %v297
    %416 = vmatpush.msra.mxu0 %v294
    %417 = vmatpush.msra.mxu0 %v291
    %418 = vmatpush.msra.mxu0 %v288
    %419 = vmatpush.msra.mxu0 %v285
    %420 = vmatpush.msra.mxu0 %v282
    %421 = vmatpush.msra.mxu0 %v279
    %422 = vmatpush.msra.mxu0 %v276
    %423 = vmatpush.msra.mxu0 %v273
    %424 = vmatpush.msra.mxu0 %v270
    %425 = vmatmul.f32.gmra.mxu0 %v403
    %v426 = vpop.f32.mrf.mxu0
    %v427 = vadd.f32 0.0, %v426
    %428 = vdwg.mxu0
    %429 = vmatpush.msra.mxu0 %v316
    %430 = vmatpush.msra.mxu0 %v313
    %431 = vmatpush.msra.mxu0 %v310
    %432 = vmatpush.msra.mxu0 %v307
    %433 = vmatpush.msra.mxu0 %v304
    %434 = vmatpush.msra.mxu0 %v301
    %435 = vmatpush.msra.mxu0 %v298
    %436 = vmatpush.msra.mxu0 %v295
    %437 = vmatpush.msra.mxu0 %v292
    %438 = vmatpush.msra.mxu0 %v289
    %439 = vmatpush.msra.mxu0 %v286
    %440 = vmatpush.msra.mxu0 %v283
    %441 = vmatpush.msra.mxu0 %v280
    %442 = vmatpush.msra.mxu0 %v277
    %443 = vmatpush.msra.mxu0 %v274
    %444 = vmatpush.msra.mxu0 %v271
    %445 = vmatmul.f32.gmra.mxu0 %v403
    %v446 = vpop.f32.mrf.mxu0
    %v447 = vadd.f32 0.0, %v446
    %448 = vdwg.mxu0
    %449 = vmatpush.msra.mxu0 %v317
    %450 = vmatpush.msra.mxu0 %v314
    %451 = vmatpush.msra.mxu0 %v311
    %452 = vmatpush.msra.mxu0 %v308
    %453 = vmatpush.msra.mxu0 %v305
    %454 = vmatpush.msra.mxu0 %v302
    %455 = vmatpush.msra.mxu0 %v299
    %456 = vmatpush.msra.mxu0 %v296
    %457 = vmatpush.msra.mxu0 %v293
    %458 = vmatpush.msra.mxu0 %v290
    %459 = vmatpush.msra.mxu0 %v287
    %460 = vmatpush.msra.mxu0 %v284
    %461 = vmatpush.msra.mxu0 %v281
    %462 = vmatpush.msra.mxu0 %v278
    %463 = vmatpush.msra.mxu0 %v275
    %464 = vmatpush.msra.mxu0 %v272
    %465 = vmatmul.f32.gmra.mxu0 %v403
    %v466 = vpop.f32.mrf.mxu0
    %v467 = vadd.f32 0.0, %v466
    %468 = vdwg.mxu0
    %v469 = vadd.f32 %v406, %v427
    %v470 = vmul.f32 %v469, 0.5
    %v471 = vtanh.pop %v470
    %v472 = vmul.f32 %v471, 0.5
    %v473 = vadd.f32 %v472, 0.5
    %v474 = vadd.f32 %v407, %v447
    %v475 = vmul.f32 %v474, 0.5
    %v476 = vtanh.pop %v475
    %v477 = vmul.f32 %v476, 0.5
    %v478 = vadd.f32 %v477, 0.5
    %v479 = vadd.f32 %v467, %v394
    %v480 = vmul.f32 %v473, %v479
    %v481 = vadd.f32 %v408, %v480
    %v482 = vtanh.pop %v481
    %v483 = vsub.f32 1.0, %v478
    %v484 = vmul.f32 %v483, %v482
    %v485 = vmul.f32 %v478, %v403
    %v486 = vadd.f32 %v484, %v485
    %s487 = scalar_lea.vmem %s5, 8
    %488 = vst [vmem:[%s487] sm:$0xff] %v486
    %s489 = scalar_lea.vmem [#allocation3], 48
    %v490 = vld [vmem:[%s489] sm:$0xff]
    %v491 = vld [vmem:[%s489 + $0x8] sm:$0xff]
    %v492 = vld [vmem:[%s489 + $0x10] sm:$0xff]
    %493 = vmatpush.msra.mxu0 %v315
    %494 = vmatpush.msra.mxu0 %v312
    %495 = vmatpush.msra.mxu0 %v309
    %496 = vmatpush.msra.mxu0 %v306
    %497 = vmatpush.msra.mxu0 %v303
    %498 = vmatpush.msra.mxu0 %v300
    %499 = vmatpush.msra.mxu0 %v297
    %500 = vmatpush.msra.mxu0 %v294
    %501 = vmatpush.msra.mxu0 %v291
    %502 = vmatpush.msra.mxu0 %v288
    %503 = vmatpush.msra.mxu0 %v285
    %504 = vmatpush.msra.mxu0 %v282
    %505 = vmatpush.msra.mxu0 %v279
    %506 = vmatpush.msra.mxu0 %v276
    %507 = vmatpush.msra.mxu0 %v273
    %508 = vmatpush.msra.mxu0 %v270
    %509 = vmatmul.f32.gmra.mxu0 %v486
    %v510 = vpop.f32.mrf.mxu0
    %v511 = vadd.f32 0.0, %v510
    %512 = vdwg.mxu0
    %513 = vmatpush.msra.mxu0 %v316
    %514 = vmatpush.msra.mxu0 %v313
    %515 = vmatpush.msra.mxu0 %v310
    %516 = vmatpush.msra.mxu0 %v307
    %517 = vmatpush.msra.mxu0 %v304
    %518 = vmatpush.msra.mxu0 %v301
    %519 = vmatpush.msra.mxu0 %v298
    %520 = vmatpush.msra.mxu0 %v295
    %521 = vmatpush.msra.mxu0 %v292
    %522 = vmatpush.msra.mxu0 %v289
    %523 = vmatpush.msra.mxu0 %v286
    %524 = vmatpush.msra.mxu0 %v283
    %525 = vmatpush.msra.mxu0 %v280
    %526 = vmatpush.msra.mxu0 %v277
    %527 = vmatpush.msra.mxu0 %v274
    %528 = vmatpush.msra.mxu0 %v271
    %529 = vmatmul.f32.gmra.mxu0 %v486
    %v530 = vpop.f32.mrf.mxu0
    %v531 = vadd.f32 0.0, %v530
    %532 = vdwg.mxu0
    %533 = vmatpush.msra.mxu0 %v317
    %534 = vmatpush.msra.mxu0 %v314
    %535 = vmatpush.msra.mxu0 %v311
    %536 = vmatpush.msra.mxu0 %v308
    %537 = vmatpush.msra.mxu0 %v305
    %538 = vmatpush.msra.mxu0 %v302
    %539 = vmatpush.msra.mxu0 %v299
    %540 = vmatpush.msra.mxu0 %v296
    %541 = vmatpush.msra.mxu0 %v293
    %542 = vmatpush.msra.mxu0 %v290
    %543 = vmatpush.msra.mxu0 %v287
    %544 = vmatpush.msra.mxu0 %v284
    %545 = vmatpush.msra.mxu0 %v281
    %546 = vmatpush.msra.mxu0 %v278
    %547 = vmatpush.msra.mxu0 %v275
    %548 = vmatpush.msra.mxu0 %v272
    %549 = vmatmul.f32.gmra.mxu0 %v486
    %v550 = vpop.f32.mrf.mxu0
    %v551 = vadd.f32 0.0, %v550
    %552 = vdwg.mxu0
    %v553 = vadd.f32 %v490, %v511
    %v554 = vmul.f32 %v553, 0.5
    %v555 = vtanh.pop %v554
    %v556 = vmul.f32 %v555, 0.5
    %v557 = vadd.f32 %v556, 0.5
    %v558 = vadd.f32 %v491, %v531
    %v559 = vmul.f32 %v558, 0.5
    %v560 = vtanh.pop %v559
    %v561 = vmul.f32 %v560, 0.5
    %v562 = vadd.f32 %v561, 0.5
    %v563 = vadd.f32 %v551, %v394
    %v564 = vmul.f32 %v557, %v563
    %v565 = vadd.f32 %v492, %v564
    %v566 = vtanh.pop %v565
    %v567 = vsub.f32 1.0, %v562
    %v568 = vmul.f32 %v567, %v566
    %v569 = vmul.f32 %v562, %v486
    %v570 = vadd.f32 %v568, %v569
    %s571 = scalar_lea.vmem %s5, 16
    %572 = vst [vmem:[%s571] sm:$0xff] %v570
    %s573 = scalar_lea.vmem [#allocation3], 72
    %v574 = vld [vmem:[%s573] sm:$0xff]
    %v575 = vld [vmem:[%s573 + $0x8] sm:$0xff]
    %v576 = vld [vmem:[%s573 + $0x10] sm:$0xff]
    %577 = vmatpush.msra.mxu0 %v315
    %578 = vmatpush.msra.mxu0 %v312
    %579 = vmatpush.msra.mxu0 %v309
    %580 = vmatpush.msra.mxu0 %v306
    %581 = vmatpush.msra.mxu0 %v303
    %582 = vmatpush.msra.mxu0 %v300
    %583 = vmatpush.msra.mxu0 %v297
    %584 = vmatpush.msra.mxu0 %v294
    %585 = vmatpush.msra.mxu0 %v291
    %586 = vmatpush.msra.mxu0 %v288
    %587 = vmatpush.msra.mxu0 %v285
    %588 = vmatpush.msra.mxu0 %v282
    %589 = vmatpush.msra.mxu0 %v279
    %590 = vmatpush.msra.mxu0 %v276
    %591 = vmatpush.msra.mxu0 %v273
    %592 = vmatpush.msra.mxu0 %v270
    %593 = vmatmul.f32.gmra.mxu0 %v570
    %v594 = vpop.f32.mrf.mxu0
    %v595 = vadd.f32 0.0, %v594
    %596 = vdwg.mxu0
    %597 = vmatpush.msra.mxu0 %v316
    %598 = vmatpush.msra.mxu0 %v313
    %599 = vmatpush.msra.mxu0 %v310
    %600 = vmatpush.msra.mxu0 %v307
    %601 = vmatpush.msra.mxu0 %v304
    %602 = vmatpush.msra.mxu0 %v301
    %603 = vmatpush.msra.mxu0 %v298
    %604 = vmatpush.msra.mxu0 %v295
    %605 = vmatpush.msra.mxu0 %v292
    %606 = vmatpush.msra.mxu0 %v289
    %607 = vmatpush.msra.mxu0 %v286
    %608 = vmatpush.msra.mxu0 %v283
    %609 = vmatpush.msra.mxu0 %v280
    %610 = vmatpush.msra.mxu0 %v277
    %611 = vmatpush.msra.mxu0 %v274
    %612 = vmatpush.msra.mxu0 %v271
    %613 = vmatmul.f32.gmra.mxu0 %v570
    %v614 = vpop.f32.mrf.mxu0
    %v615 = vadd.f32 0.0, %v614
    %616 = vdwg.mxu0
    %617 = vmatpush.msra.mxu0 %v317
    %618 = vmatpush.msra.mxu0 %v314
    %619 = vmatpush.msra.mxu0 %v311
    %620 = vmatpush.msra.mxu0 %v308
    %621 = vmatpush.msra.mxu0 %v305
    %622 = vmatpush.msra.mxu0 %v302
    %623 = vmatpush.msra.mxu0 %v299
    %624 = vmatpush.msra.mxu0 %v296
    %625 = vmatpush.msra.mxu0 %v293
    %626 = vmatpush.msra.mxu0 %v290
    %627 = vmatpush.msra.mxu0 %v287
    %628 = vmatpush.msra.mxu0 %v284
    %629 = vmatpush.msra.mxu0 %v281
    %630 = vmatpush.msra.mxu0 %v278
    %631 = vmatpush.msra.mxu0 %v275
    %632 = vmatpush.msra.mxu0 %v272
    %633 = vmatmul.f32.gmra.mxu0 %v570
    %v634 = vpop.f32.mrf.mxu0
    %v635 = vadd.f32 0.0, %v634
    %636 = vdwg.mxu0
    %v637 = vadd.f32 %v574, %v595
    %v638 = vmul.f32 %v637, 0.5
    %v639 = vtanh.pop %v638
    %v640 = vmul.f32 %v639, 0.5
    %v641 = vadd.f32 %v640, 0.5
    %v642 = vadd.f32 %v575, %v615
    %v643 = vmul.f32 %v642, 0.5
    %v644 = vtanh.pop %v643
    %v645 = vmul.f32 %v644, 0.5
    %v646 = vadd.f32 %v645, 0.5
    %v647 = vadd.f32 %v635, %v394
    %v648 = vmul.f32 %v641, %v647
    %v649 = vadd.f32 %v576, %v648
    %v650 = vtanh.pop %v649
    %v651 = vsub.f32 1.0, %v646
    %v652 = vmul.f32 %v651, %v650
    %v653 = vmul.f32 %v646, %v570
    %v654 = vadd.f32 %v652, %v653
    %s655 = scalar_lea.vmem %s5, 24
    %656 = vst [vmem:[%s655] sm:$0xff] %v654
    %s657 = scalar_lea.vmem [#allocation3], 96
    %v658 = vld [vmem:[%s657] sm:$0xff]
    %v659 = vld [vmem:[%s657 + $0x8] sm:$0xff]
    %v660 = vld [vmem:[%s657 + $0x10] sm:$0xff]
    %661 = vmatpush.msra.mxu0 %v315
    %662 = vmatpush.msra.mxu0 %v312
    %663 = vmatpush.msra.mxu0 %v309
    %664 = vmatpush.msra.mxu0 %v306
    %665 = vmatpush.msra.mxu0 %v303
    %666 = vmatpush.msra.mxu0 %v300
    %667 = vmatpush.msra.mxu0 %v297
    %668 = vmatpush.msra.mxu0 %v294
    %669 = vmatpush.msra.mxu0 %v291
    %670 = vmatpush.msra.mxu0 %v288
    %671 = vmatpush.msra.mxu0 %v285
    %672 = vmatpush.msra.mxu0 %v282
    %673 = vmatpush.msra.mxu0 %v279
    %674 = vmatpush.msra.mxu0 %v276
    %675 = vmatpush.msra.mxu0 %v273
    %676 = vmatpush.msra.mxu0 %v270
    %677 = vmatmul.f32.gmra.mxu0 %v654
    %v678 = vpop.f32.mrf.mxu0
    %v679 = vadd.f32 0.0, %v678
    %680 = vdwg.mxu0
    %681 = vmatpush.msra.mxu0 %v316
    %682 = vmatpush.msra.mxu0 %v313
    %683 = vmatpush.msra.mxu0 %v310
    %684 = vmatpush.msra.mxu0 %v307
    %685 = vmatpush.msra.mxu0 %v304
    %686 = vmatpush.msra.mxu0 %v301
    %687 = vmatpush.msra.mxu0 %v298
    %688 = vmatpush.msra.mxu0 %v295
    %689 = vmatpush.msra.mxu0 %v292
    %690 = vmatpush.msra.mxu0 %v289
    %691 = vmatpush.msra.mxu0 %v286
    %692 = vmatpush.msra.mxu0 %v283
    %693 = vmatpush.msra.mxu0 %v280
    %694 = vmatpush.msra.mxu0 %v277
    %695 = vmatpush.msra.mxu0 %v274
    %696 = vmatpush.msra.mxu0 %v271
    %697 = vmatmul.f32.gmra.mxu0 %v654
    %v698 = vpop.f32.mrf.mxu0
    %v699 = vadd.f32 0.0, %v698
    %700 = vdwg.mxu0
    %701 = vmatpush.msra.mxu0 %v317
    %702 = vmatpush.msra.mxu0 %v314
    %703 = vmatpush.msra.mxu0 %v311
    %704 = vmatpush.msra.mxu0 %v308
    %705 = vmatpush.msra.mxu0 %v305
    %706 = vmatpush.msra.mxu0 %v302
    %707 = vmatpush.msra.mxu0 %v299
    %708 = vmatpush.msra.mxu0 %v296
    %709 = vmatpush.msra.mxu0 %v293
    %710 = vmatpush.msra.mxu0 %v290
    %711 = vmatpush.msra.mxu0 %v287
    %712 = vmatpush.msra.mxu0 %v284
    %713 = vmatpush.msra.mxu0 %v281
    %714 = vmatpush.msra.mxu0 %v278
    %715 = vmatpush.msra.mxu0 %v275
    %716 = vmatpush.msra.mxu0 %v272
    %717 = vmatmul.f32.gmra.mxu0 %v654
    %v718 = vpop.f32.mrf.mxu0
    %v719 = vadd.f32 0.0, %v718
    %720 = vdwg.mxu0
    %v721 = vadd.f32 %v658, %v679
    %v722 = vmul.f32 %v721, 0.5
    %v723 = vtanh.pop %v722
    %v724 = vmul.f32 %v723, 0.5
    %v725 = vadd.f32 %v724, 0.5
    %v726 = vadd.f32 %v659, %v699
    %v727 = vmul.f32 %v726, 0.5
    %v728 = vtanh.pop %v727
    %v729 = vmul.f32 %v728, 0.5
    %v730 = vadd.f32 %v729, 0.5
    %v731 = vadd.f32 %v719, %v394
    %v732 = vmul.f32 %v725, %v731
    %v733 = vadd.f32 %v660, %v732
    %v734 = vtanh.pop %v733
    %v735 = vsub.f32 1.0, %v730
    %v736 = vmul.f32 %v735, %v734
    %v737 = vmul.f32 %v730, %v654
    %v738 = vadd.f32 %v736, %v737
    %s739 = scalar_lea.vmem %s5, 32
    %740 = vst [vmem:[%s739] sm:$0xff] %v738
    %s741 = scalar_lea.vmem [#allocation3], 120
    %v742 = vld [vmem:[%s741] sm:$0xff]
    %v743 = vld [vmem:[%s741 + $0x8] sm:$0xff]
    %v744 = vld [vmem:[%s741 + $0x10] sm:$0xff]
    %745 = vmatpush.msra.mxu0 %v315
    %746 = vmatpush.msra.mxu0 %v312
    %747 = vmatpush.msra.mxu0 %v309
    %748 = vmatpush.msra.mxu0 %v306
    %749 = vmatpush.msra.mxu0 %v303
    %750 = vmatpush.msra.mxu0 %v300
    %751 = vmatpush.msra.mxu0 %v297
    %752 = vmatpush.msra.mxu0 %v294
    %753 = vmatpush.msra.mxu0 %v291
    %754 = vmatpush.msra.mxu0 %v288
    %755 = vmatpush.msra.mxu0 %v285
    %756 = vmatpush.msra.mxu0 %v282
    %757 = vmatpush.msra.mxu0 %v279
    %758 = vmatpush.msra.mxu0 %v276
    %759 = vmatpush.msra.mxu0 %v273
    %760 = vmatpush.msra.mxu0 %v270
    %761 = vmatmul.f32.gmra.mxu0 %v738
    %v762 = vpop.f32.mrf.mxu0
    %v763 = vadd.f32 0.0, %v762
    %764 = vdwg.mxu0
    %765 = vmatpush.msra.mxu0 %v316
    %766 = vmatpush.msra.mxu0 %v313
    %767 = vmatpush.msra.mxu0 %v310
    %768 = vmatpush.msra.mxu0 %v307
    %769 = vmatpush.msra.mxu0 %v304
    %770 = vmatpush.msra.mxu0 %v301
    %771 = vmatpush.msra.mxu0 %v298
    %772 = vmatpush.msra.mxu0 %v295
    %773 = vmatpush.msra.mxu0 %v292
    %774 = vmatpush.msra.mxu0 %v289
    %775 = vmatpush.msra.mxu0 %v286
    %776 = vmatpush.msra.mxu0 %v283
    %777 = vmatpush.msra.mxu0 %v280
    %778 = vmatpush.msra.mxu0 %v277
    %779 = vmatpush.msra.mxu0 %v274
    %780 = vmatpush.msra.mxu0 %v271
    %781 = vmatmul.f32.gmra.mxu0 %v738
    %v782 = vpop.f32.mrf.mxu0
    %v783 = vadd.f32 0.0, %v782
    %784 = vdwg.mxu0
    %785 = vmatpush.msra.mxu0 %v317
    %786 = vmatpush.msra.mxu0 %v314
    %787 = vmatpush.msra.mxu0 %v311
    %788 = vmatpush.msra.mxu0 %v308
    %789 = vmatpush.msra.mxu0 %v305
    %790 = vmatpush.msra.mxu0 %v302
    %791 = vmatpush.msra.mxu0 %v299
    %792 = vmatpush.msra.mxu0 %v296
    %793 = vmatpush.msra.mxu0 %v293
    %794 = vmatpush.msra.mxu0 %v290
    %795 = vmatpush.msra.mxu0 %v287
    %796 = vmatpush.msra.mxu0 %v284
    %797 = vmatpush.msra.mxu0 %v281
    %798 = vmatpush.msra.mxu0 %v278
    %799 = vmatpush.msra.mxu0 %v275
    %800 = vmatpush.msra.mxu0 %v272
    %801 = vmatmul.f32.gmra.mxu0 %v738
    %v802 = vpop.f32.mrf.mxu0
    %v803 = vadd.f32 0.0, %v802
    %804 = vdwg.mxu0
    %v805 = vadd.f32 %v742, %v763
    %v806 = vmul.f32 %v805, 0.5
    %v807 = vtanh.pop %v806
    %v808 = vmul.f32 %v807, 0.5
    %v809 = vadd.f32 %v808, 0.5
    %v810 = vadd.f32 %v743, %v783
    %v811 = vmul.f32 %v810, 0.5
    %v812 = vtanh.pop %v811
    %v813 = vmul.f32 %v812, 0.5
    %v814 = vadd.f32 %v813, 0.5
    %v815 = vadd.f32 %v803, %v394
    %v816 = vmul.f32 %v809, %v815
    %v817 = vadd.f32 %v744, %v816
    %v818 = vtanh.pop %v817
    %v819 = vsub.f32 1.0, %v814
    %v820 = vmul.f32 %v819, %v818
    %v821 = vmul.f32 %v814, %v738
    %v822 = vadd.f32 %v820, %v821
    %s823 = scalar_lea.vmem %s5, 40
    %824 = vst [vmem:[%s823] sm:$0xff] %v822
    %s825 = scalar_lea.vmem [#allocation3], 144
    %v826 = vld [vmem:[%s825] sm:$0xff]
    %v827 = vld [vmem:[%s825 + $0x8] sm:$0xff]
    %v828 = vld [vmem:[%s825 + $0x10] sm:$0xff]
    %829 = vmatpush.msra.mxu0 %v315
    %830 = vmatpush.msra.mxu0 %v312
    %831 = vmatpush.msra.mxu0 %v309
    %832 = vmatpush.msra.mxu0 %v306
    %833 = vmatpush.msra.mxu0 %v303
    %834 = vmatpush.msra.mxu0 %v300
    %835 = vmatpush.msra.mxu0 %v297
    %836 = vmatpush.msra.mxu0 %v294
    %837 = vmatpush.msra.mxu0 %v291
    %838 = vmatpush.msra.mxu0 %v288
    %839 = vmatpush.msra.mxu0 %v285
    %840 = vmatpush.msra.mxu0 %v282
    %841 = vmatpush.msra.mxu0 %v279
    %842 = vmatpush.msra.mxu0 %v276
    %843 = vmatpush.msra.mxu0 %v273
    %844 = vmatpush.msra.mxu0 %v270
    %845 = vmatmul.f32.gmra.mxu0 %v822
    %v846 = vpop.f32.mrf.mxu0
    %v847 = vadd.f32 0.0, %v846
    %848 = vdwg.mxu0
    %849 = vmatpush.msra.mxu0 %v316
    %850 = vmatpush.msra.mxu0 %v313
    %851 = vmatpush.msra.mxu0 %v310
    %852 = vmatpush.msra.mxu0 %v307
    %853 = vmatpush.msra.mxu0 %v304
    %854 = vmatpush.msra.mxu0 %v301
    %855 = vmatpush.msra.mxu0 %v298
    %856 = vmatpush.msra.mxu0 %v295
    %857 = vmatpush.msra.mxu0 %v292
    %858 = vmatpush.msra.mxu0 %v289
    %859 = vmatpush.msra.mxu0 %v286
    %860 = vmatpush.msra.mxu0 %v283
    %861 = vmatpush.msra.mxu0 %v280
    %862 = vmatpush.msra.mxu0 %v277
    %863 = vmatpush.msra.mxu0 %v274
    %864 = vmatpush.msra.mxu0 %v271
    %865 = vmatmul.f32.gmra.mxu0 %v822
    %v866 = vpop.f32.mrf.mxu0
    %v867 = vadd.f32 0.0, %v866
    %868 = vdwg.mxu0
    %869 = vmatpush.msra.mxu0 %v317
    %870 = vmatpush.msra.mxu0 %v314
    %871 = vmatpush.msra.mxu0 %v311
    %872 = vmatpush.msra.mxu0 %v308
    %873 = vmatpush.msra.mxu0 %v305
    %874 = vmatpush.msra.mxu0 %v302
    %875 = vmatpush.msra.mxu0 %v299
    %876 = vmatpush.msra.mxu0 %v296
    %877 = vmatpush.msra.mxu0 %v293
    %878 = vmatpush.msra.mxu0 %v290
    %879 = vmatpush.msra.mxu0 %v287
    %880 = vmatpush.msra.mxu0 %v284
    %881 = vmatpush.msra.mxu0 %v281
    %882 = vmatpush.msra.mxu0 %v278
    %883 = vmatpush.msra.mxu0 %v275
    %884 = vmatpush.msra.mxu0 %v272
    %885 = vmatmul.f32.gmra.mxu0 %v822
    %v886 = vpop.f32.mrf.mxu0
    %v887 = vadd.f32 0.0, %v886
    %888 = vdwg.mxu0
    %v889 = vadd.f32 %v826, %v847
    %v890 = vmul.f32 %v889, 0.5
    %v891 = vtanh.pop %v890
    %v892 = vmul.f32 %v891, 0.5
    %v893 = vadd.f32 %v892, 0.5
    %v894 = vadd.f32 %v827, %v867
    %v895 = vmul.f32 %v894, 0.5
    %v896 = vtanh.pop %v895
    %v897 = vmul.f32 %v896, 0.5
    %v898 = vadd.f32 %v897, 0.5
    %v899 = vadd.f32 %v887, %v394
    %v900 = vmul.f32 %v893, %v899
    %v901 = vadd.f32 %v828, %v900
    %v902 = vtanh.pop %v901
    %v903 = vsub.f32 1.0, %v898
    %v904 = vmul.f32 %v903, %v902
    %v905 = vmul.f32 %v898, %v822
    %v906 = vadd.f32 %v904, %v905
    %s907 = scalar_lea.vmem %s5, 48
    %908 = vst [vmem:[%s907] sm:$0xff] %v906
    %s909 = scalar_lea.vmem [#allocation3], 168
    %v910 = vld [vmem:[%s909] sm:$0xff]
    %v911 = vld [vmem:[%s909 + $0x8] sm:$0xff]
    %v912 = vld [vmem:[%s909 + $0x10] sm:$0xff]
    %913 = vmatpush.msra.mxu0 %v315
    %914 = vmatpush.msra.mxu0 %v312
    %915 = vmatpush.msra.mxu0 %v309
    %916 = vmatpush.msra.mxu0 %v306
    %917 = vmatpush.msra.mxu0 %v303
    %918 = vmatpush.msra.mxu0 %v300
    %919 = vmatpush.msra.mxu0 %v297
    %920 = vmatpush.msra.mxu0 %v294
    %921 = vmatpush.msra.mxu0 %v291
    %922 = vmatpush.msra.mxu0 %v288
    %923 = vmatpush.msra.mxu0 %v285
    %924 = vmatpush.msra.mxu0 %v282
    %925 = vmatpush.msra.mxu0 %v279
    %926 = vmatpush.msra.mxu0 %v276
    %927 = vmatpush.msra.mxu0 %v273
    %928 = vmatpush.msra.mxu0 %v270
    %929 = vmatmul.f32.gmra.mxu0 %v906
    %v930 = vpop.f32.mrf.mxu0
    %v931 = vadd.f32 0.0, %v930
    %932 = vdwg.mxu0
    %933 = vmatpush.msra.mxu0 %v316
    %934 = vmatpush.msra.mxu0 %v313
    %935 = vmatpush.msra.mxu0 %v310
    %936 = vmatpush.msra.mxu0 %v307
    %937 = vmatpush.msra.mxu0 %v304
    %938 = vmatpush.msra.mxu0 %v301
    %939 = vmatpush.msra.mxu0 %v298
    %940 = vmatpush.msra.mxu0 %v295
    %941 = vmatpush.msra.mxu0 %v292
    %942 = vmatpush.msra.mxu0 %v289
    %943 = vmatpush.msra.mxu0 %v286
    %944 = vmatpush.msra.mxu0 %v283
    %945 = vmatpush.msra.mxu0 %v280
    %946 = vmatpush.msra.mxu0 %v277
    %947 = vmatpush.msra.mxu0 %v274
    %948 = vmatpush.msra.mxu0 %v271
    %949 = vmatmul.f32.gmra.mxu0 %v906
    %v950 = vpop.f32.mrf.mxu0
    %v951 = vadd.f32 0.0, %v950
    %952 = vdwg.mxu0
    %953 = vmatpush.msra.mxu0 %v317
    %954 = vmatpush.msra.mxu0 %v314
    %955 = vmatpush.msra.mxu0 %v311
    %956 = vmatpush.msra.mxu0 %v308
    %957 = vmatpush.msra.mxu0 %v305
    %958 = vmatpush.msra.mxu0 %v302
    %959 = vmatpush.msra.mxu0 %v299
    %960 = vmatpush.msra.mxu0 %v296
    %961 = vmatpush.msra.mxu0 %v293
    %962 = vmatpush.msra.mxu0 %v290
    %963 = vmatpush.msra.mxu0 %v287
    %964 = vmatpush.msra.mxu0 %v284
    %965 = vmatpush.msra.mxu0 %v281
    %966 = vmatpush.msra.mxu0 %v278
    %967 = vmatpush.msra.mxu0 %v275
    %968 = vmatpush.msra.mxu0 %v272
    %969 = vmatmul.f32.gmra.mxu0 %v906
    %v970 = vpop.f32.mrf.mxu0
    %v971 = vadd.f32 0.0, %v970
    %972 = vdwg.mxu0
    %v973 = vadd.f32 %v910, %v931
    %v974 = vmul.f32 %v973, 0.5
    %v975 = vtanh.pop %v974
    %v976 = vmul.f32 %v975, 0.5
    %v977 = vadd.f32 %v976, 0.5
    %v978 = vadd.f32 %v911, %v951
    %v979 = vmul.f32 %v978, 0.5
    %v980 = vtanh.pop %v979
    %v981 = vmul.f32 %v980, 0.5
    %v982 = vadd.f32 %v981, 0.5
    %v983 = vadd.f32 %v971, %v394
    %v984 = vmul.f32 %v977, %v983
    %v985 = vadd.f32 %v912, %v984
    %v986 = vtanh.pop %v985
    %v987 = vsub.f32 1.0, %v982
    %v988 = vmul.f32 %v987, %v986
    %v989 = vmul.f32 %v982, %v906
    %v990 = vadd.f32 %v988, %v989
    %s991 = scalar_lea.vmem %s5, 56
    %992 = vst [vmem:[%s991] sm:$0xff] %v990
    %993 = vst [vmem:[#allocation2] sm:$0xff] %v990
    %994 = vst [vmem:[%s6] sm:$0xff] %v990
    // Predicated region
    $region34: #{seq2seq_encoder_forward.2} parent=1 // pred_check
      _
    $region35: #{seq2seq_encoder_forward.2} parent=1 // pred_check_branch
      %996 = sbr.rel (0) target = $region37
    $region36: #{seq2seq_encoder_forward.2} parent=1 // pred_region
      _
    $region37: #{seq2seq_encoder_forward.2} parent=1 // pred_fallthru
      _
    // Predicated region
    $region38: #{seq2seq_encoder_forward.2} parent=1 // pred_check
      _
    $region39: #{seq2seq_encoder_forward.2} parent=1 // pred_check_branch
      %998 = sbr.rel (0) target = $region41
    $region40: #{seq2seq_encoder_forward.2} parent=1 // pred_region
      _
    $region41: #{seq2seq_encoder_forward.2} parent=1 // pred_fallthru
      _
    // Predicated region
    $region42: #{seq2seq_encoder_forward.2} parent=1 // pred_check
      _
    $region43: #{seq2seq_encoder_forward.2} parent=1 // pred_check_branch
      %1000 = sbr.rel (0) target = $region45
    $region44: #{seq2seq_encoder_forward.2} parent=1 // pred_region
      _
    $region45: #{seq2seq_encoder_forward.2} parent=1 // pred_fallthru
      _
    // Predicated region
    $region46: #{seq2seq_encoder_forward.2} parent=1 // pred_check
      _
    $region47: #{seq2seq_encoder_forward.2} parent=1 // pred_check_branch
      %1002 = sbr.rel (0) target = $region49
    $region48: #{seq2seq_encoder_forward.2} parent=1 // pred_region
      _
    $region49: #{seq2seq_encoder_forward.2} parent=1 // pred_fallthru
      _
    %1003 = vsyncpa [#allocation5], 1
    %1004 = vsyncpa [#allocation7], 1

</llo_original>
